<compile_context>
chip_gen: v5e
topology: v5e:2x2
jax: 0.10.0
libtpu: 0.0.40
codegen_flags: <defaults>
</compile_context>

<pallas_src>
import math

import jax
import jax.numpy as jnp
from jax.experimental import pallas as pl
from jax.experimental.pallas import tpu as pltpu


def _vmem_capacity_bytes():
    """Physical VMEM per TensorCore; conservative fallback if the query fails."""
    try:
        return int(pltpu.get_tpu_info().vmem_capacity_bytes)
    except Exception:
        return 64 << 20   # v7x per-TC size: safe lower bound across generations


def _coembed_kernel(drug_ref, tgt_ref, fstab_ref, wd_ref, bd_ref, wt_ref, bt_ref,
                    o_ref,
                    xd_sc, xt_sc, dot_sc, dsq_sc, tsq_sc):
    j = pl.program_id(1)                                   # latent (reduction) axis

    @pl.when(j == 0)
    def _init():
        tb = tgt_ref.shape[0]
        dfs = fstab_ref.shape[1]
        vp = fstab_ref.shape[0]
        dt = xt_sc.shape[1] - dfs
        n_fs = tgt_ref.shape[1] - dt

        # Cast resident activations to bf16 ONCE per batch tile (not per latent tile).
        xd_sc[...] = drug_ref[...].astype(jnp.bfloat16)
        xt_sc[:, :dt] = tgt_ref[:, :dt].astype(jnp.bfloat16)

        # FoldSeek index embedding + mean pool as (counts / N) @ table (MXU gather).
        # Vocab sits on the LANE axis (Vp padded to 128), N on sublanes.
        idx = tgt_ref[:, dt:].astype(jnp.int32)                        # (tb, N)
        iota_v = jax.lax.broadcasted_iota(jnp.int32, (tb, n_fs, vp), 2)
        onehot = (idx[:, :, None] == iota_v).astype(jnp.float32)       # (tb, N, Vp)
        counts = jnp.sum(onehot, axis=1) * (1.0 / n_fs)                # (tb, Vp)
        fs_emb = jnp.dot(counts, fstab_ref[...],
                         preferred_element_type=jnp.float32)           # (tb, Dfs)
        xt_sc[:, dt:] = fs_emb.astype(jnp.bfloat16)

        dot_sc[...] = jnp.zeros_like(dot_sc)
        dsq_sc[...] = jnp.zeros_like(dsq_sc)
        tsq_sc[...] = jnp.zeros_like(tsq_sc)

    # One fused matmul per projector per latent tile (bf16 inputs, f32 accumulate);
    # bias add + ReLU stay in f32.
    dp = jnp.dot(xd_sc[...], wd_ref[0], preferred_element_type=jnp.float32) + bd_ref[...]
    dp = jnp.maximum(dp, 0.0)                                          # drug projection tile
    tp = jnp.dot(xt_sc[...], wt_ref[0], preferred_element_type=jnp.float32) + bt_ref[...]
    tp = jnp.maximum(tp, 0.0)                                          # target projection tile

    # Accumulate the cosine-similarity pieces across latent tiles (scalar per row).
    dot_sc[...] += jnp.sum(dp * tp, axis=-1, keepdims=True)
    dsq_sc[...] += jnp.sum(dp * dp, axis=-1, keepdims=True)
    tsq_sc[...] += jnp.sum(tp * tp, axis=-1, keepdims=True)

    @pl.when(j == pl.num_programs(1) - 1)
    def _finalize():
        # torch CosineSimilarity doc formula: x1.x2 / max(||x1||*||x2||, eps=1e-8).
        denom = jnp.maximum(jnp.sqrt(dsq_sc[...]) * jnp.sqrt(tsq_sc[...]), 1e-8)
        o_ref[...] = (dot_sc[...] / denom).astype(o_ref.dtype)


def simple_coembedding_foldseekx(drug, target, params):
    """classify=True / Cosine forward. drug: [B, Dd] f32; target: [B, Dt + N] f32."""
    wd = params["drug_w"]          # (nj, Dd, tn)      bf16, pre-tiled contiguous slabs
    wt = params["tgt_w"]           # (nj, Dt+Dfs, tn)  bf16, pre-tiled, un-split (fused)
    bd = params["drug_b"]          # (1, L) f32
    bt = params["tgt_b"]           # (1, L) f32
    fstab = params["fs_table"]     # (Vp, Dfs) f32, vocab padded to 128 (lane axis)
    Dt = params["target_shape"]

    nj, Dd, tn = wd.shape
    Dtf = wt.shape[1]
    Vp, Dfs = fstab.shape
    L = nj * tn
    B = drug.shape[0]

    # TODO(synk): the module's `target.shape[1] == target_shape` pass-through branch is
    # shape-incompatible with _target_projector (expects Dt+Dfs inputs); not supported.
    assert target.shape[1] > Dt, "expected packed [PLM embedding | FoldSeek indices] target"
    N = target.shape[1] - Dt

    # Batch tiling: small B -> one full-batch tile (no padding, no extra wrapper HBM
    # pass); large B -> 256-row tiles so the leading "parallel" axis can use both
    # TensorCores on v7x.
    if B <= 128:
        tb, Bp = B, B
    else:
        tb = 256
        Bp = ((B + tb - 1) // tb) * tb
        if Bp != B:
            drug = jnp.pad(drug, ((0, Bp - B), (0, 0)))
            target = jnp.pad(target, ((0, Bp - B), (0, 0)))   # idx 0 -> zero embedding row
    n_b = Bp // tb
    grid = (n_b, nj)

    # VMEM budget: double-buffered blocks + scratch + headroom, capped at ~85% of the
    # physical per-core VMEM (v7x ~54 MiB; v5e/v6e ~108 MiB).
    block_bytes = (tb * Dd * 4 + tb * (Dt + N) * 4 + Vp * Dfs * 4
                   + (Dd + Dtf) * tn * 2 + 2 * tn * 4 + tb * 4)
    scratch_bytes = tb * (Dd + Dtf) * 2 + 3 * tb * 4
    vmem_limit = int(min(max(2 * block_bytes + scratch_bytes + (2 << 20), 4 << 20),
                         int(_vmem_capacity_bytes() * 0.85)))

    cost = pl.CostEstimate(
        flops=2 * Bp * L * (Dd + Dtf) + 2 * Bp * Vp * Dfs + 8 * Bp * L,
        transcendentals=2 * Bp,
        bytes_accessed=n_b * ((Dd + Dtf) * L * 2 + 2 * L * 4 + Vp * Dfs * 4)
                       + Bp * (Dd + Dt + N) * 4 + Bp * 4)

    out = pl.pallas_call(
        _coembed_kernel,
        out_shape=jax.ShapeDtypeStruct((Bp, 1), jnp.float32),
        grid_spec=pltpu.PrefetchScalarGridSpec(
            num_scalar_prefetch=0,
            grid=grid,
            in_specs=[
                pl.BlockSpec((tb, Dd), lambda b, j: (b, 0)),         # drug activations
                pl.BlockSpec((tb, Dt + N), lambda b, j: (b, 0)),     # packed target (PLM | idx)
                pl.BlockSpec((Vp, Dfs), lambda b, j: (0, 0)),        # FoldSeek table (resident)
                pl.BlockSpec((1, Dd, tn), lambda b, j: (j, 0, 0)),   # drug weight slab (contig)
                pl.BlockSpec((1, tn), lambda b, j: (0, j)),          # drug bias tile
                pl.BlockSpec((1, Dtf, tn), lambda b, j: (j, 0, 0)),  # fused target weight slab
                pl.BlockSpec((1, tn), lambda b, j: (0, j)),          # target bias tile
            ],
            out_specs=pl.BlockSpec((tb, 1), lambda b, j: (b, 0)),
            scratch_shapes=[
                pltpu.VMEM((tb, Dd), jnp.bfloat16),     # drug activations, bf16 (cast once)
                pltpu.VMEM((tb, Dtf), jnp.bfloat16),    # [PLM | pooled FoldSeek], bf16
                pltpu.VMEM((tb, 1), jnp.float32),       # <drug_proj, target_proj>
                pltpu.VMEM((tb, 1), jnp.float32),       # ||drug_proj||^2
                pltpu.VMEM((tb, 1), jnp.float32),       # ||target_proj||^2
            ]),
        compiler_params=pltpu.CompilerParams(
            dimension_semantics=("parallel", "arbitrary"),   # batch parallel, latent = reduction
            vmem_limit_bytes=vmem_limit),
        cost_estimate=cost,
    )(drug, target, fstab, wd, bd, wt, bt)

    return out[:B, 0]    # matches `distance.squeeze()` for B > 1


def make_params(key, drug_shape, target_shape, latent_dim, fs_dim,
                vocab=22, block_n=512):
    """Deterministic init. Returns (kernel params with one-time layout prep, f32 originals)."""
    kd, kdb, kt, ktb, kf = jax.random.split(key, 5)
    wd_oi = jax.random.normal(kd, (latent_dim, drug_shape), jnp.float32) * math.sqrt(
        2.0 / (latent_dim + drug_shape))                               # xavier-normal, [out, in]
    wt_oi = jax.random.normal(kt, (latent_dim, target_shape + fs_dim), jnp.float32) * math.sqrt(
        2.0 / (latent_dim + target_shape + fs_dim))
    bd = jax.random.normal(kdb, (latent_dim,), jnp.float32) * 0.02
    bt = jax.random.normal(ktb, (latent_dim,), jnp.float32) * 0.02
    fs_table = jax.random.normal(kf, (vocab, fs_dim), jnp.float32) * 0.02
    fs_table = fs_table.at[0].set(0.0)                                 # padding_idx=0 row is zero
    vpad = ((vocab + 127) // 128) * 128                                # vocab on the LANE axis
    fs_table = jnp.pad(fs_table, ((0, vpad - vocab), (0, 0)))

    tn = min(block_n, latent_dim)
    assert latent_dim % tn == 0 and tn % 128 == 0, (latent_dim, tn)

    # One-time, load-time layout prep (NOT per call): transpose to [in, out], cast to
    # bf16 and pre-tile to [L//tn, in, tn] so each per-step weight DMA is one
    # fully contiguous slab.
    def tile(w_oi):
        w_io = w_oi.T                                                  # (in, L)
        d_in = w_io.shape[0]
        return (w_io.reshape(d_in, latent_dim // tn, tn)
                    .transpose(1, 0, 2).astype(jnp.bfloat16))          # (nj, in, tn)

    params = dict(
        drug_w=tile(wd_oi),
        drug_b=bd.reshape(1, latent_dim),
        tgt_w=tile(wt_oi),                 # fused [Dt | Dfs] rows, not split
        tgt_b=bt.reshape(1, latent_dim),
        fs_table=fs_table,
        target_shape=target_shape,
    )
    params_ref = dict(
        drug_w=wd_oi.T, drug_b=params["drug_b"],
        tgt_w=wt_oi.T, tgt_b=params["tgt_b"],
        fs_table=fs_table, target_shape=target_shape,
    )
    return params, params_ref


def _split_target(target, p):
    Dt = p["target_shape"]
    plm = target[:, :Dt]
    fs_idx = target[:, Dt:].astype(jnp.int32)
    fs_emb = jnp.take(p["fs_table"], fs_idx, axis=0).mean(axis=1)
    return plm, fs_emb


def _cosine(dp, tp):
    num = jnp.sum(dp * tp, axis=1)
    den = jnp.maximum(jnp.sqrt(jnp.sum(dp * dp, axis=1) * jnp.sum(tp * tp, axis=1)), 1e-8)
    return num / den


def reference_matched(drug, target, p):
    """Plain-JAX reference using the kernel's bf16-matmul / f32-accumulate math."""
    plm, fs_emb = _split_target(target, p)
    xt = jnp.concatenate([plm, fs_emb], axis=1).astype(jnp.bfloat16)
    dp = jnp.maximum(
        jnp.dot(drug.astype(jnp.bfloat16), p["drug_w"].astype(jnp.bfloat16),
                preferred_element_type=jnp.float32) + p["drug_b"], 0.0)
    tp = jnp.maximum(
        jnp.dot(xt, p["tgt_w"].astype(jnp.bfloat16),
                preferred_element_type=jnp.float32) + p["tgt_b"], 0.0)
    return _cosine(dp, tp)


def reference_f32(drug, target, p):
    """Plain-JAX f32 reference matching the original PyTorch module's math."""
    plm, fs_emb = _split_target(target, p)
    xt = jnp.concatenate([plm, fs_emb], axis=1)
    dp = jnp.maximum(jnp.dot(drug, p["drug_w"]) + p["drug_b"], 0.0)
    tp = jnp.maximum(jnp.dot(xt, p["tgt_w"]) + p["tgt_b"], 0.0)
    return _cosine(dp, tp)


if __name__ == "__main__":
    # Small shapes consistent with the module (scaled-down drug/target/latent dims).
    B = 2
    drug_shape, target_shape = 256, 128
    latent_dim, fs_dim = 1024, 128     # latent tiled as 2 x 512 (block_n default 512)
    n_fs, vocab = 8, 22

    key = jax.random.PRNGKey(0)
    k_par, k_drug, k_plm, k_idx = jax.random.split(key, 4)
    params, params_ref = make_params(k_par, drug_shape, target_shape, latent_dim, fs_dim,
                                     vocab=vocab, block_n=512)

    drug = jax.random.normal(k_drug, (B, drug_shape), jnp.float32)
    plm = jax.random.normal(k_plm, (B, target_shape), jnp.float32)
    fs_idx = jax.random.randint(k_idx, (B, n_fs), 0, vocab)
    # Packed module input: [PLM embedding | FoldSeek indices (as floats)].
    target = jnp.concatenate([plm, fs_idx.astype(jnp.float32)], axis=1)

    out = simple_coembedding_foldseekx(drug, target, params)
    out = jax.block_until_ready(out)

    ref_m = reference_matched(drug, target, params_ref)
    ref_f = reference_f32(drug, target, params_ref)

    assert out.shape == (B,), out.shape
    assert jnp.allclose(out, ref_m, atol=2e-3, rtol=2e-3), (out, ref_m)
    assert jnp.allclose(out, ref_f, atol=5e-2, rtol=5e-2), (out, ref_f)
    print("KERNEL_OK")
</pallas_src>

<mosaic_0001>
module attributes {stable_mosaic.version = 11 : i64} {
  func.func @_coembed_kernel(%arg0: i32, %arg1: i32, %arg2: memref<2x256xf32, #tpu.memory_space<vmem>>, %arg3: memref<2x136xf32, #tpu.memory_space<vmem>>, %arg4: memref<128x128xf32, #tpu.memory_space<vmem>>, %arg5: memref<1x256x512xbf16, #tpu.memory_space<vmem>>, %arg6: memref<1x512xf32, #tpu.memory_space<vmem>>, %arg7: memref<1x256x512xbf16, #tpu.memory_space<vmem>>, %arg8: memref<1x512xf32, #tpu.memory_space<vmem>>, %arg9: memref<2x1xf32, #tpu.memory_space<vmem>>, %arg10: memref<2x256xbf16, #tpu.memory_space<vmem>>, %arg11: memref<2x256xbf16, #tpu.memory_space<vmem>>, %arg12: memref<2x1xf32, #tpu.memory_space<vmem>>, %arg13: memref<2x1xf32, #tpu.memory_space<vmem>>, %arg14: memref<2x1xf32, #tpu.memory_space<vmem>>) attributes {dimension_semantics = [#tpu.dimension_semantics<parallel>, #tpu.dimension_semantics<arbitrary>], iteration_bounds = array<i64: 1, 2>, scalar_prefetch = 0 : i64, scratch_operands = 5 : i64, tpu.core_type = #tpu.core_type<tc>, window_params = [{transform_indices = @transform_0, window_bounds = array<i64: 2, 256>}, {transform_indices = @transform_1, window_bounds = array<i64: 2, 136>}, {pipeline_mode = #tpu.pipeline_mode<synchronous>, transform_indices = @transform_2, window_bounds = array<i64: 128, 128>}, {transform_indices = @transform_3, window_bounds = array<i64: 1, 256, 512>}, {transform_indices = @transform_4, window_bounds = array<i64: 1, 512>}, {transform_indices = @transform_5, window_bounds = array<i64: 1, 256, 512>}, {transform_indices = @transform_6, window_bounds = array<i64: 1, 512>}, {transform_indices = @transform_7, window_bounds = array<i64: 2, 1>}]} {
    %c0_i32 = arith.constant 0 : i32
    %0 = arith.cmpi eq, %arg1, %c0_i32 : i32
    %1 = arith.extui %0 : i1 to i32
    %c0_i32_0 = arith.constant 0 : i32
    %2 = arith.cmpi ne, %1, %c0_i32_0 : i32
    scf.if %2 {
      %c0_33 = arith.constant 0 : index
      %c0_34 = arith.constant 0 : index
      %42 = vector.load %arg2[%c0_33, %c0_34] : memref<2x256xf32, #tpu.memory_space<vmem>>, vector<2x256xf32>
      %43 = arith.truncf %42 : vector<2x256xf32> to vector<2x256xbf16>
      %c0_35 = arith.constant 0 : index
      %c0_36 = arith.constant 0 : index
      %44 = vector.load %arg10[%c0_35, %c0_36] : memref<2x256xbf16, #tpu.memory_space<vmem>>, vector<2x256xbf16>
      tpu.vector_store %arg10[%c0_35, %c0_36], %43 {strides = array<i32>} : memref<2x256xbf16, #tpu.memory_space<vmem>>, vector<2x256xbf16>,
      %c0_37 = arith.constant 0 : index
      %c0_38 = arith.constant 0 : index
      %45 = vector.load %arg3[%c0_37, %c0_38] : memref<2x136xf32, #tpu.memory_space<vmem>>, vector<2x128xf32>
      %46 = arith.truncf %45 : vector<2x128xf32> to vector<2x128xbf16>
      %c0_39 = arith.constant 0 : index
      %c0_40 = arith.constant 0 : index
      %47 = vector.load %arg11[%c0_39, %c0_40] : memref<2x256xbf16, #tpu.memory_space<vmem>>, vector<2x128xbf16>
      tpu.vector_store %arg11[%c0_39, %c0_40], %46 {strides = array<i32>} : memref<2x256xbf16, #tpu.memory_space<vmem>>, vector<2x128xbf16>,
      %c0_41 = arith.constant 0 : index
      %c128 = arith.constant 128 : index
      %48 = vector.load %arg3[%c0_41, %c128] : memref<2x136xf32, #tpu.memory_space<vmem>>, vector<2x8xf32>
      %49 = arith.fptosi %48 : vector<2x8xf32> to vector<2x8xi32>
      %50 = tpu.iota {dimensions = array<i32: 2>} : vector<2x8x128xi32>
      %51 = vector.shape_cast %49 : vector<2x8xi32> to vector<2x8x1xi32>
      %52 = vector.broadcast %51 : vector<2x8x1xi32> to vector<2x8x128xi32>
      %53 = arith.cmpi eq, %52, %50 : vector<2x8x128xi32>
      %54 = arith.extui %53 : vector<2x8x128xi1> to vector<2x8x128xi32>
      %55 = arith.sitofp %54 : vector<2x8x128xi32> to vector<2x8x128xf32>
      %cst_42 = arith.constant dense<0.000000e+00> : vector<2x128xf32>
      %56 = vector.multi_reduction <add>, %55, %cst_42 [1] : vector<2x8x128xf32> to vector<2x128xf32>
      %cst_43 = arith.constant 1.250000e-01 : f32
      %57 = vector.broadcast %cst_43 : f32 to vector<2x128xf32>
      %58 = arith.mulf %56, %57 : vector<2x128xf32>
      %c0_44 = arith.constant 0 : index
      %c0_45 = arith.constant 0 : index
      %59 = vector.load %arg4[%c0_44, %c0_45] : memref<128x128xf32, #tpu.memory_space<vmem>>, vector<128x128xf32>
      %cst_46 = arith.constant dense<0.000000e+00> : vector<2x128xf32>
      %60 = tpu.matmul %58, %59, %cst_46 {dimension_numbers = #tpu.dot_dimension_numbers<[1], [0], [0], [1], [0, 0, 1, 1], [], []>} : vector<2x128xf32>, vector<128x128xf32>, vector<2x128xf32> -> vector<2x128xf32>
      %61 = arith.truncf %60 : vector<2x128xf32> to vector<2x128xbf16>
      %c0_47 = arith.constant 0 : index
      %c128_48 = arith.constant 128 : index
      %62 = vector.load %arg11[%c0_47, %c128_48] : memref<2x256xbf16, #tpu.memory_space<vmem>>, vector<2x128xbf16>
      tpu.vector_store %arg11[%c0_47, %c128_48], %61 {strides = array<i32>} : memref<2x256xbf16, #tpu.memory_space<vmem>>, vector<2x128xbf16>,
      %cst_49 = arith.constant 0.000000e+00 : f32
      %63 = vector.broadcast %cst_49 : f32 to vector<2x1xf32>
      %c0_50 = arith.constant 0 : index
      %c0_51 = arith.constant 0 : index
      %64 = vector.load %arg12[%c0_50, %c0_51] : memref<2x1xf32, #tpu.memory_space<vmem>>, vector<2x1xf32>
      tpu.vector_store %arg12[%c0_50, %c0_51], %63 {strides = array<i32>} : memref<2x1xf32, #tpu.memory_space<vmem>>, vector<2x1xf32>,
      %cst_52 = arith.constant 0.000000e+00 : f32
      %65 = vector.broadcast %cst_52 : f32 to vector<2x1xf32>
      %c0_53 = arith.constant 0 : index
      %c0_54 = arith.constant 0 : index
      %66 = vector.load %arg13[%c0_53, %c0_54] : memref<2x1xf32, #tpu.memory_space<vmem>>, vector<2x1xf32>
      tpu.vector_store %arg13[%c0_53, %c0_54], %65 {strides = array<i32>} : memref<2x1xf32, #tpu.memory_space<vmem>>, vector<2x1xf32>,
      %cst_55 = arith.constant 0.000000e+00 : f32
      %67 = vector.broadcast %cst_55 : f32 to vector<2x1xf32>
      %c0_56 = arith.constant 0 : index
      %c0_57 = arith.constant 0 : index
      %68 = vector.load %arg14[%c0_56, %c0_57] : memref<2x1xf32, #tpu.memory_space<vmem>>, vector<2x1xf32>
      tpu.vector_store %arg14[%c0_56, %c0_57], %67 {strides = array<i32>} : memref<2x1xf32, #tpu.memory_space<vmem>>, vector<2x1xf32>,
    } else {
    }
    %c0 = arith.constant 0 : index
    %c0_1 = arith.constant 0 : index
    %3 = vector.load %arg10[%c0, %c0_1] : memref<2x256xbf16, #tpu.memory_space<vmem>>, vector<2x256xbf16>
    %c0_2 = arith.constant 0 : index
    %c0_3 = arith.constant 0 : index
    %c0_4 = arith.constant 0 : index
    %4 = vector.load %arg5[%c0_2, %c0_3, %c0_4] : memref<1x256x512xbf16, #tpu.memory_space<vmem>>, vector<1x256x512xbf16>
    %5 = vector.shape_cast %4 : vector<1x256x512xbf16> to vector<256x512xbf16>
    %cst = arith.constant dense<0.000000e+00> : vector<2x512xf32>
    %6 = tpu.matmul %3, %5, %cst {dimension_numbers = #tpu.dot_dimension_numbers<[1], [0], [0], [1], [0, 0, 1, 1], [], []>} : vector<2x256xbf16>, vector<256x512xbf16>, vector<2x512xf32> -> vector<2x512xf32>
    %c0_5 = arith.constant 0 : index
    %c0_6 = arith.constant 0 : index
    %7 = vector.load %arg6[%c0_5, %c0_6] : memref<1x512xf32, #tpu.memory_space<vmem>>, vector<1x512xf32>
    %8 = vector.broadcast %7 : vector<1x512xf32> to vector<2x512xf32>
    %9 = arith.addf %6, %8 : vector<2x512xf32>
    %cst_7 = arith.constant 0.000000e+00 : f32
    %10 = vector.broadcast %cst_7 : f32 to vector<2x512xf32>
    %11 = arith.maximumf %9, %10 : vector<2x512xf32>
    %c0_8 = arith.constant 0 : index
    %c0_9 = arith.constant 0 : index
    %12 = vector.load %arg11[%c0_8, %c0_9] : memref<2x256xbf16, #tpu.memory_space<vmem>>, vector<2x256xbf16>
    %c0_10 = arith.constant 0 : index
    %c0_11 = arith.constant 0 : index
    %c0_12 = arith.constant 0 : index
    %13 = vector.load %arg7[%c0_10, %c0_11, %c0_12] : memref<1x256x512xbf16, #tpu.memory_space<vmem>>, vector<1x256x512xbf16>
    %14 = vector.shape_cast %13 : vector<1x256x512xbf16> to vector<256x512xbf16>
    %cst_13 = arith.constant dense<0.000000e+00> : vector<2x512xf32>
    %15 = tpu.matmul %12, %14, %cst_13 {dimension_numbers = #tpu.dot_dimension_numbers<[1], [0], [0], [1], [0, 0, 1, 1], [], []>} : vector<2x256xbf16>, vector<256x512xbf16>, vector<2x512xf32> -> vector<2x512xf32>
    %c0_14 = arith.constant 0 : index
    %c0_15 = arith.constant 0 : index
    %16 = vector.load %arg8[%c0_14, %c0_15] : memref<1x512xf32, #tpu.memory_space<vmem>>, vector<1x512xf32>
    %17 = vector.broadcast %16 : vector<1x512xf32> to vector<2x512xf32>
    %18 = arith.addf %15, %17 : vector<2x512xf32>
    %cst_16 = arith.constant 0.000000e+00 : f32
    %19 = vector.broadcast %cst_16 : f32 to vector<2x512xf32>
    %20 = arith.maximumf %18, %19 : vector<2x512xf32>
    %c0_17 = arith.constant 0 : index
    %c0_18 = arith.constant 0 : index
    %21 = vector.load %arg12[%c0_17, %c0_18] : memref<2x1xf32, #tpu.memory_space<vmem>>, vector<2x1xf32>
    %22 = arith.mulf %11, %20 : vector<2x512xf32>
    %cst_19 = arith.constant dense<0.000000e+00> : vector<2xf32>
    %23 = vector.multi_reduction <add>, %22, %cst_19 [1] : vector<2x512xf32> to vector<2xf32>
    %24 = vector.shape_cast %23 : vector<2xf32> to vector<2x1xf32>
    %25 = arith.addf %21, %24 : vector<2x1xf32>
    %c0_20 = arith.constant 0 : index
    %c0_21 = arith.constant 0 : index
    %26 = vector.load %arg12[%c0_20, %c0_21] : memref<2x1xf32, #tpu.memory_space<vmem>>, vector<2x1xf32>
    tpu.vector_store %arg12[%c0_20, %c0_21], %25 {strides = array<i32>} : memref<2x1xf32, #tpu.memory_space<vmem>>, vector<2x1xf32>,
    %c0_22 = arith.constant 0 : index
    %c0_23 = arith.constant 0 : index
    %27 = vector.load %arg13[%c0_22, %c0_23] : memref<2x1xf32, #tpu.memory_space<vmem>>, vector<2x1xf32>
    %28 = arith.mulf %11, %11 : vector<2x512xf32>
    %cst_24 = arith.constant dense<0.000000e+00> : vector<2xf32>
    %29 = vector.multi_reduction <add>, %28, %cst_24 [1] : vector<2x512xf32> to vector<2xf32>
    %30 = vector.shape_cast %29 : vector<2xf32> to vector<2x1xf32>
    %31 = arith.addf %27, %30 : vector<2x1xf32>
    %c0_25 = arith.constant 0 : index
    %c0_26 = arith.constant 0 : index
    %32 = vector.load %arg13[%c0_25, %c0_26] : memref<2x1xf32, #tpu.memory_space<vmem>>, vector<2x1xf32>
    tpu.vector_store %arg13[%c0_25, %c0_26], %31 {strides = array<i32>} : memref<2x1xf32, #tpu.memory_space<vmem>>, vector<2x1xf32>,
    %c0_27 = arith.constant 0 : index
    %c0_28 = arith.constant 0 : index
    %33 = vector.load %arg14[%c0_27, %c0_28] : memref<2x1xf32, #tpu.memory_space<vmem>>, vector<2x1xf32>
    %34 = arith.mulf %20, %20 : vector<2x512xf32>
    %cst_29 = arith.constant dense<0.000000e+00> : vector<2xf32>
    %35 = vector.multi_reduction <add>, %34, %cst_29 [1] : vector<2x512xf32> to vector<2xf32>
    %36 = vector.shape_cast %35 : vector<2xf32> to vector<2x1xf32>
    %37 = arith.addf %33, %36 : vector<2x1xf32>
    %c0_30 = arith.constant 0 : index
    %c0_31 = arith.constant 0 : index
    %38 = vector.load %arg14[%c0_30, %c0_31] : memref<2x1xf32, #tpu.memory_space<vmem>>, vector<2x1xf32>
    tpu.vector_store %arg14[%c0_30, %c0_31], %37 {strides = array<i32>} : memref<2x1xf32, #tpu.memory_space<vmem>>, vector<2x1xf32>,
    %c1_i32 = arith.constant 1 : i32
    %39 = arith.cmpi eq, %arg1, %c1_i32 : i32
    %40 = arith.extui %39 : i1 to i32
    %c0_i32_32 = arith.constant 0 : i32
    %41 = arith.cmpi ne, %40, %c0_i32_32 : i32
    scf.if %41 {
      %c0_33 = arith.constant 0 : index
      %c0_34 = arith.constant 0 : index
      %42 = vector.load %arg13[%c0_33, %c0_34] : memref<2x1xf32, #tpu.memory_space<vmem>>, vector<2x1xf32>
      %43 = math.sqrt %42 : vector<2x1xf32>
      %c0_35 = arith.constant 0 : index
      %c0_36 = arith.constant 0 : index
      %44 = vector.load %arg14[%c0_35, %c0_36] : memref<2x1xf32, #tpu.memory_space<vmem>>, vector<2x1xf32>
      %45 = math.sqrt %44 : vector<2x1xf32>
      %46 = arith.mulf %43, %45 : vector<2x1xf32>
      %cst_37 = arith.constant 9.99999993E-9 : f32
      %47 = vector.broadcast %cst_37 : f32 to vector<2x1xf32>
      %48 = arith.maximumf %46, %47 : vector<2x1xf32>
      %c0_38 = arith.constant 0 : index
      %c0_39 = arith.constant 0 : index
      %49 = vector.load %arg12[%c0_38, %c0_39] : memref<2x1xf32, #tpu.memory_space<vmem>>, vector<2x1xf32>
      %50 = arith.divf %49, %48 : vector<2x1xf32>
      %c0_40 = arith.constant 0 : index
      %c0_41 = arith.constant 0 : index
      %51 = vector.load %arg9[%c0_40, %c0_41] : memref<2x1xf32, #tpu.memory_space<vmem>>, vector<2x1xf32>
      tpu.vector_store %arg9[%c0_40, %c0_41], %50 {strides = array<i32>} : memref<2x1xf32, #tpu.memory_space<vmem>>, vector<2x1xf32>,
    } else {
    }
    return
  }
  func.func @transform_0(%arg0: i32, %arg1: i32) -> (i32, i32) {
    %c0_i32 = arith.constant 0 : i32
    %c0_i32_0 = arith.constant 0 : i32
    return %arg0, %c0_i32 : i32, i32
  }
  func.func @transform_1(%arg0: i32, %arg1: i32) -> (i32, i32) {
    %c0_i32 = arith.constant 0 : i32
    %c0_i32_0 = arith.constant 0 : i32
    return %arg0, %c0_i32 : i32, i32
  }
  func.func @transform_2(%arg0: i32, %arg1: i32) -> (i32, i32) {
    %c0_i32 = arith.constant 0 : i32
    %c0_i32_0 = arith.constant 0 : i32
    %c0_i32_1 = arith.constant 0 : i32
    return %c0_i32, %c0_i32_0 : i32, i32
  }
  func.func @transform_3(%arg0: i32, %arg1: i32) -> (i32, i32, i32) {
    %c0_i32 = arith.constant 0 : i32
    %c0_i32_0 = arith.constant 0 : i32
    %c0_i32_1 = arith.constant 0 : i32
    return %arg1, %c0_i32, %c0_i32_0 : i32, i32, i32
  }
  func.func @transform_4(%arg0: i32, %arg1: i32) -> (i32, i32) {
    %c0_i32 = arith.constant 0 : i32
    %c0_i32_0 = arith.constant 0 : i32
    return %c0_i32, %arg1 : i32, i32
  }
  func.func @transform_5(%arg0: i32, %arg1: i32) -> (i32, i32, i32) {
    %c0_i32 = arith.constant 0 : i32
    %c0_i32_0 = arith.constant 0 : i32
    %c0_i32_1 = arith.constant 0 : i32
    return %arg1, %c0_i32, %c0_i32_0 : i32, i32, i32
  }
  func.func @transform_6(%arg0: i32, %arg1: i32) -> (i32, i32) {
    %c0_i32 = arith.constant 0 : i32
    %c0_i32_0 = arith.constant 0 : i32
    return %c0_i32, %arg1 : i32, i32
  }
  func.func @transform_7(%arg0: i32, %arg1: i32) -> (i32, i32) {
    %c0_i32 = arith.constant 0 : i32
    %c0_i32_0 = arith.constant 0 : i32
    return %arg0, %c0_i32 : i32, i32
  }
}

</mosaic_0001>

<llo_original>
// kernel: tpu_custom_call.1
$region0: #{tpu_custom_call.1}
  #allocation0 [shape = 'u32[]', space=smem, size = 0x4, offset = 0x4, fixed_abs, tag = 'smem constant byte address 0x4 - core index']
  #allocation1 [shape = 'u32[72,128]{1,0:T(1,128)}', space=vmem, size = 0x9000, scoped, tag = 'internal scratch']
  #allocation2 [shape = 'bf16[2,256]{1,0:T(2,128)(2,1)}', space=vmem, size = 0x400, scoped, tag = 'scratch operand']
  #allocation3 [shape = 'bf16[2,256]{1,0:T(2,128)(2,1)}', space=vmem, size = 0x400, scoped, tag = 'scratch operand']
  #allocation4 [shape = 'f32[2,1]{1,0:T(2,128)}', space=vmem, size = 0x400, scoped, tag = 'scratch operand']
  #allocation5 [shape = 'f32[2,1]{1,0:T(2,128)}', space=vmem, size = 0x400, scoped, tag = 'scratch operand']
  #allocation6 [shape = 'f32[2,1]{1,0:T(2,128)}', space=vmem, size = 0x400, scoped, tag = 'scratch operand']
  %s0 = inlined_call_operand.hbm [shape: f32[2,256], index: 0, kind: input, shape index: {}]
  %s1 = inlined_call_operand.hbm [shape: f32[2,136], index: 1, kind: input, shape index: {}]
  %s2 = inlined_call_operand.hbm [shape: f32[128,128], index: 2, kind: input, shape index: {}]
  %s3 = inlined_call_operand.hbm [shape: bf16[2,256,512], index: 3, kind: input, shape index: {}]
  %s4 = inlined_call_operand.hbm [shape: f32[1,1024], index: 4, kind: input, shape index: {}]
  %s5 = inlined_call_operand.hbm [shape: bf16[2,256,512], index: 5, kind: input, shape index: {}]
  %s6 = inlined_call_operand.hbm [shape: f32[1,1024], index: 6, kind: input, shape index: {}]
  %s7 = inlined_call_operand.vmem [shape: f32[2,1], index: 7, kind: output, shape index: {}]
  %s8 = sld [smem:[#allocation0]]
  $region97: #{tpu_custom_call.1} parent=0
    _
  %s10 = ssub.s32 1, %s8
  %s11 = scalar_select 0, %s10, %s8
  $region1: #{tpu_custom_call.1} parent=0
    #allocation7 [shape = 'u8[2048]{0}', space=vmem, size = 0x800, scoped, tag = 'input window, operand 0, single buffered']
    #allocation8 [shape = 's32[2]{0}', space=sflag, size = 0x8, scoped, tag = 'scoped memory for tpu_custom_call.1']
    #allocation9 [shape = 'u8[2048]{0}', space=vmem, size = 0x800, scoped, tag = 'input window, operand 1, single buffered']
    #allocation10 [shape = 's32[1]{0}', space=sflag, size = 0x4, scoped, tag = 'scoped memory for tpu_custom_call.1']
    #allocation11 [shape = 'u8[65536]{0}', space=vmem, size = 0x10000, scoped, tag = 'input window, operand 2, single buffered']
    #allocation12 [shape = 'u8[524288]{0}', space=vmem, size = 0x80000, scoped, tag = 'input window, operand 3']
    #allocation13 [shape = 's32[2]{0}', space=sflag, size = 0x8, scoped, tag = 'scoped memory for tpu_custom_call.1']
    #allocation14 [shape = 'u8[4096]{0}', space=vmem, size = 0x1000, scoped, tag = 'input window, operand 4']
    #allocation15 [shape = 'u8[524288]{0}', space=vmem, size = 0x80000, scoped, tag = 'input window, operand 5']
    #allocation16 [shape = 's32[2]{0}', space=sflag, size = 0x8, scoped, tag = 'scoped memory for tpu_custom_call.1']
    #allocation17 [shape = 'u8[4096]{0}', space=vmem, size = 0x1000, scoped, tag = 'input window, operand 6']
    %12 = vsyncpa [#allocation8], 0
    %13 = vsyncpa [#allocation10], 0
    %14 = vsyncpa [#allocation13], 0
    %s15 = scalar_lea.sflag [#allocation13], 1
    %16 = vsyncpa %s15, 0
    %17 = vsyncpa [#allocation16], 0
    %s18 = scalar_lea.sflag [#allocation16], 1
    %19 = vsyncpa %s18, 0
    loop: start=0, step=1, limit=4
    $region2: #{tpu_custom_call.1} parent=1 // loop_pre_header
      _
    $region3: #{tpu_custom_call.1} parent=1 // loop_header
      %s21 = sphi 0, %s25
      %p22 = scmp.ge.s32.totalorder %s21, 4
      %s28 = sphi 0, %s40
      %s29 = sphi 0, %s36
      %s30 = sphi 0, %s28
      %s31 = sphi 0, %s29
      %s32 = sphi 0, %s30
      %s33 = sphi 0, %s31
      %s43 = sphi 0, %s45
      %s46 = sphi 0, %s43
      %s47 = sphi 0, %s46
      %s63 = sphi 0, %s47
      %s69 = sphi 0, %s71
      %s72 = sphi 0, %s69
      %s73 = sphi 0, %s72
      %s89 = sphi 0, %s73
      %s93 = sphi 0, %s93
      %s95 = sphi 0, %s93
      %s96 = sphi 0, %s95
      %s110 = sphi 0, %s96
      %s116 = sphi 0, %s118
      %s119 = sphi 0, %s116
      %s120 = sphi 0, %s119
      %s136 = sphi 0, %s120
      %s142 = sphi 0, %s144
      %s145 = sphi 0, %s142
      %s146 = sphi 0, %s145
      %s162 = sphi 0, %s146
      %s168 = sphi 0, %s170
      %s171 = sphi 0, %s168
      %s172 = sphi 0, %s171
      %s188 = sphi 0, %s172
      %s194 = sphi 0, %s196
      %s197 = sphi 0, %s194
      %s198 = sphi 0, %s197
      %s214 = sphi 0, %s198
      %s220 = sphi 0, %s222
      %s223 = sphi 0, %s220
      %s224 = sphi 0, %s223
      %s240 = sphi 0, %s224
    $region4: #{tpu_custom_call.1} parent=1 // loop_header_branch
      %24 = sbr.rel (%p22) target = $region8
    $region5: #{tpu_custom_call.1} parent=1 // loop_body
      %s26 = ssub.s32 %s21, 1
      %s27 = ssub.s32 %s21, 2
      %s34 = sadd.s32 1, %s29
      %p35 = scmp.ge.s32.totalorder %s34, 2
      %s36 = scalar_select %p35, 0, %s34
      %s37 = sadd.s32 1, %s28
      %s38 = scalar_select %p35, %s37, %s28
      %p39 = scmp.ge.s32.totalorder %s38, 1
      %s40 = scalar_select %p39, 0, %s38
      %s41 = ssub.s32 %s28, %s40
      %p42 = scmp.eq.s32.totalorder %s41, 0
      %s44 = sadd.s32 %s43, 1
      %s45 = scalar_select %p42, %s43, %s44
      %p48 = pneg %p42
      %p49 = scmp.eq.s32.totalorder %s21, 1
      %p50 = por %p48, %p49
      %p51 = scmp.ne.s32.totalorder %s43, %s46
      %p52 = scmp.eq.s32.totalorder %s21, 0
      %p53 = por %p51, %p52
      %p54 = scmp.ne.s32.totalorder %s43, %s46
      %p55 = scmp.eq.s32.totalorder %s26, 1
      %p56 = por %p54, %p55
      %p57 = scmp.ne.s32.totalorder %s46, %s47
      %p58 = scmp.eq.s32.totalorder %s26, 0
      %p59 = por %p57, %p58
      %p60 = scmp.ne.s32.totalorder %s46, %s47
      %p61 = scmp.eq.s32.totalorder %s27, 1
      %p62 = por %p60, %p61
      %p64 = scmp.ne.s32.totalorder %s47, %s63
      %p65 = scmp.eq.s32.totalorder %s27, 0
      %p66 = por %p64, %p65
      %s67 = ssub.s32 %s28, %s40
      %p68 = scmp.eq.s32.totalorder %s67, 0
      %s70 = sadd.s32 %s69, 1
      %s71 = scalar_select %p68, %s69, %s70
      %p74 = pneg %p68
      %p75 = scmp.eq.s32.totalorder %s21, 1
      %p76 = por %p74, %p75
      %p77 = scmp.ne.s32.totalorder %s69, %s72
      %p78 = scmp.eq.s32.totalorder %s21, 0
      %p79 = por %p77, %p78
      %p80 = scmp.ne.s32.totalorder %s69, %s72
      %p81 = scmp.eq.s32.totalorder %s26, 1
      %p82 = por %p80, %p81
      %p83 = scmp.ne.s32.totalorder %s72, %s73
      %p84 = scmp.eq.s32.totalorder %s26, 0
      %p85 = por %p83, %p84
      %p86 = scmp.ne.s32.totalorder %s72, %s73
      %p87 = scmp.eq.s32.totalorder %s27, 1
      %p88 = por %p86, %p87
      %p90 = scmp.ne.s32.totalorder %s73, %s89
      %p91 = scmp.eq.s32.totalorder %s27, 0
      %p92 = por %p90, %p91
      %s94 = sadd.s32 %s93, 1
      %p97 = scmp.eq.s32.totalorder %s21, 1
      %p98 = scmp.ne.s32.totalorder %s93, %s95
      %p99 = scmp.eq.s32.totalorder %s21, 0
      %p100 = por %p98, %p99
      %p101 = scmp.ne.s32.totalorder %s93, %s95
      %p102 = scmp.eq.s32.totalorder %s26, 1
      %p103 = por %p101, %p102
      %p104 = scmp.ne.s32.totalorder %s95, %s96
      %p105 = scmp.eq.s32.totalorder %s26, 0
      %p106 = por %p104, %p105
      %p107 = scmp.ne.s32.totalorder %s95, %s96
      %p108 = scmp.eq.s32.totalorder %s27, 1
      %p109 = por %p107, %p108
      %p111 = scmp.ne.s32.totalorder %s96, %s110
      %p112 = scmp.eq.s32.totalorder %s27, 0
      %p113 = por %p111, %p112
      %s114 = ssub.s32 %s29, %s36
      %p115 = scmp.eq.s32.totalorder %s114, 0
      %s117 = sadd.s32 %s116, 1
      %s118 = scalar_select %p115, %s116, %s117
      %p121 = pneg %p115
      %p122 = scmp.eq.s32.totalorder %s21, 1
      %p123 = por %p121, %p122
      %p124 = scmp.ne.s32.totalorder %s116, %s119
      %p125 = scmp.eq.s32.totalorder %s21, 0
      %p126 = por %p124, %p125
      %p127 = scmp.ne.s32.totalorder %s116, %s119
      %p128 = scmp.eq.s32.totalorder %s26, 1
      %p129 = por %p127, %p128
      %p130 = scmp.ne.s32.totalorder %s119, %s120
      %p131 = scmp.eq.s32.totalorder %s26, 0
      %p132 = por %p130, %p131
      %p133 = scmp.ne.s32.totalorder %s119, %s120
      %p134 = scmp.eq.s32.totalorder %s27, 1
      %p135 = por %p133, %p134
      %p137 = scmp.ne.s32.totalorder %s120, %s136
      %p138 = scmp.eq.s32.totalorder %s27, 0
      %p139 = por %p137, %p138
      %s140 = ssub.s32 %s29, %s36
      %p141 = scmp.eq.s32.totalorder %s140, 0
      %s143 = sadd.s32 %s142, 1
      %s144 = scalar_select %p141, %s142, %s143
      %p147 = pneg %p141
      %p148 = scmp.eq.s32.totalorder %s21, 1
      %p149 = por %p147, %p148
      %p150 = scmp.ne.s32.totalorder %s142, %s145
      %p151 = scmp.eq.s32.totalorder %s21, 0
      %p152 = por %p150, %p151
      %p153 = scmp.ne.s32.totalorder %s142, %s145
      %p154 = scmp.eq.s32.totalorder %s26, 1
      %p155 = por %p153, %p154
      %p156 = scmp.ne.s32.totalorder %s145, %s146
      %p157 = scmp.eq.s32.totalorder %s26, 0
      %p158 = por %p156, %p157
      %p159 = scmp.ne.s32.totalorder %s145, %s146
      %p160 = scmp.eq.s32.totalorder %s27, 1
      %p161 = por %p159, %p160
      %p163 = scmp.ne.s32.totalorder %s146, %s162
      %p164 = scmp.eq.s32.totalorder %s27, 0
      %p165 = por %p163, %p164
      %s166 = ssub.s32 %s29, %s36
      %p167 = scmp.eq.s32.totalorder %s166, 0
      %s169 = sadd.s32 %s168, 1
      %s170 = scalar_select %p167, %s168, %s169
      %p173 = pneg %p167
      %p174 = scmp.eq.s32.totalorder %s21, 1
      %p175 = por %p173, %p174
      %p176 = scmp.ne.s32.totalorder %s168, %s171
      %p177 = scmp.eq.s32.totalorder %s21, 0
      %p178 = por %p176, %p177
      %p179 = scmp.ne.s32.totalorder %s168, %s171
      %p180 = scmp.eq.s32.totalorder %s26, 1
      %p181 = por %p179, %p180
      %p182 = scmp.ne.s32.totalorder %s171, %s172
      %p183 = scmp.eq.s32.totalorder %s26, 0
      %p184 = por %p182, %p183
      %p185 = scmp.ne.s32.totalorder %s171, %s172
      %p186 = scmp.eq.s32.totalorder %s27, 1
      %p187 = por %p185, %p186
      %p189 = scmp.ne.s32.totalorder %s172, %s188
      %p190 = scmp.eq.s32.totalorder %s27, 0
      %p191 = por %p189, %p190
      %s192 = ssub.s32 %s29, %s36
      %p193 = scmp.eq.s32.totalorder %s192, 0
      %s195 = sadd.s32 %s194, 1
      %s196 = scalar_select %p193, %s194, %s195
      %p199 = pneg %p193
      %p200 = scmp.eq.s32.totalorder %s21, 1
      %p201 = por %p199, %p200
      %p202 = scmp.ne.s32.totalorder %s194, %s197
      %p203 = scmp.eq.s32.totalorder %s21, 0
      %p204 = por %p202, %p203
      %p205 = scmp.ne.s32.totalorder %s194, %s197
      %p206 = scmp.eq.s32.totalorder %s26, 1
      %p207 = por %p205, %p206
      %p208 = scmp.ne.s32.totalorder %s197, %s198
      %p209 = scmp.eq.s32.totalorder %s26, 0
      %p210 = por %p208, %p209
      %p211 = scmp.ne.s32.totalorder %s197, %s198
      %p212 = scmp.eq.s32.totalorder %s27, 1
      %p213 = por %p211, %p212
      %p215 = scmp.ne.s32.totalorder %s198, %s214
      %p216 = scmp.eq.s32.totalorder %s27, 0
      %p217 = por %p215, %p216
      %s218 = ssub.s32 %s28, %s40
      %p219 = scmp.eq.s32.totalorder %s218, 0
      %s221 = sadd.s32 %s220, 1
      %s222 = scalar_select %p219, %s220, %s221
      %p225 = pneg %p219
      %p226 = scmp.eq.s32.totalorder %s21, 1
      %p227 = por %p225, %p226
      %p228 = scmp.ne.s32.totalorder %s220, %s223
      %p229 = scmp.eq.s32.totalorder %s21, 0
      %p230 = por %p228, %p229
      %p231 = scmp.ne.s32.totalorder %s220, %s223
      %p232 = scmp.eq.s32.totalorder %s26, 1
      %p233 = por %p231, %p232
      %p234 = scmp.ne.s32.totalorder %s223, %s224
      %p235 = scmp.eq.s32.totalorder %s26, 0
      %p236 = por %p234, %p235
      %p237 = scmp.ne.s32.totalorder %s223, %s224
      %p238 = scmp.eq.s32.totalorder %s27, 1
      %p239 = por %p237, %p238
      %p241 = scmp.ne.s32.totalorder %s224, %s240
      %p242 = scmp.eq.s32.totalorder %s27, 0
      %p243 = por %p241, %p242
      %p244 = scmp.le.s32.totalorder 1, %s21
      %p245 = scmp.lt.s32.totalorder %s21, 3
      %p246 = pnand %p244, %p245
      %p247 = pneg %p246
      // Predicated region
      $region9: #{tpu_custom_call.1} parent=5 // pred_check
        _
      $region10: #{tpu_custom_call.1} parent=5 // pred_check_branch
        %249 = sbr.rel (%p246) target = $region12
      $region11: #{tpu_custom_call.1} parent=5 // pred_region
        %s250 = ssub.s32 %s21, 1
        // Predicated region
        $region13: #{tpu_custom_call.1} parent=11 // pred_check
          %p251 = pneg %p59
        $region14: #{tpu_custom_call.1} parent=11 // pred_check_branch
          %253 = sbr.rel (%p251) target = $region16
        $region15: #{tpu_custom_call.1} parent=11 // pred_region
          %255 = vsyncadd [#allocation8], 0
          %s256 = smul.addr %s30, 2
          %s257 = smul.addr %s256, 2
          %s258 = scalar_lea.hbm %s0, %s257
          %s260 = sshll.u32 %s258, 4
          %s261 = int_to_ptr.hbm [resolvable:$true] %s260
          %s262 = sshll.u32 [#allocation7], 4
          %s263 = int_to_ptr.vmem [resolvable:$true] %s262
          %265 = dma.hbm_to_vmem [thread:$0]  %s261, 64, %s263, [#allocation8]
        $region16: #{tpu_custom_call.1} parent=11 // pred_fallthru
          _
        // Predicated region
        $region17: #{tpu_custom_call.1} parent=11 // pred_check
          %p266 = pneg %p85
        $region18: #{tpu_custom_call.1} parent=11 // pred_check_branch
          %268 = sbr.rel (%p266) target = $region20
        $region19: #{tpu_custom_call.1} parent=11 // pred_region
          %270 = vsyncadd [#allocation10], 0
          %s271 = smul.addr %s30, 2
          %s272 = smul.addr %s271, 2
          %s273 = scalar_lea.hbm %s1, %s272
          %s275 = sshll.u32 %s273, 4
          %s276 = int_to_ptr.hbm [resolvable:$true] %s275
          %s277 = sshll.u32 [#allocation9], 4
          %s278 = int_to_ptr.vmem [resolvable:$true] %s277
          %280 = dma.hbm_to_vmem [thread:$0]  %s276, 64, %s278, [#allocation10]
        $region20: #{tpu_custom_call.1} parent=11 // pred_fallthru
          _
        // Predicated region
        $region21: #{tpu_custom_call.1} parent=11 // pred_check
          %p281 = pneg %p106
        $region22: #{tpu_custom_call.1} parent=11 // pred_check_branch
          %283 = sbr.rel (%p281) target = $region24
        $region23: #{tpu_custom_call.1} parent=11 // pred_region
          %285 = vsyncadd [#allocation10], 0
          %s286 = sshll.u32 %s2, 4
          %s287 = int_to_ptr.hbm [resolvable:$true] %s286
          %s288 = sshll.u32 [#allocation11], 4
          %s289 = int_to_ptr.vmem [resolvable:$true] %s288
          %294 = dma.hbm_to_vmem [thread:$0]  %s287, 2048, %s289, [#allocation10], 128, 128, 8
        $region24: #{tpu_custom_call.1} parent=11 // pred_fallthru
          _
      $region12: #{tpu_custom_call.1} parent=5 // pred_fallthru
        _
      %p295 = scmp.lt.s32.totalorder %s21, 2
      // Predicated region
      $region25: #{tpu_custom_call.1} parent=5 // pred_check
        %p296 = pneg %p295
      $region26: #{tpu_custom_call.1} parent=5 // pred_check_branch
        %298 = sbr.rel (%p296) target = $region28
      $region27: #{tpu_custom_call.1} parent=5 // pred_region
        // Predicated region
        $region29: #{tpu_custom_call.1} parent=27 // pred_check
          %p299 = pneg %p126
        $region30: #{tpu_custom_call.1} parent=27 // pred_check_branch
          %301 = sbr.rel (%p299) target = $region32
        $region31: #{tpu_custom_call.1} parent=27 // pred_region
          %s302 = sand.u32 %s21, 1
          %s303 = scalar_lea.sflag [#allocation13], %s302
          %s304 = sand.u32 %s116, 1
          %s305 = smul.addr %s304, 512
          %s306 = scalar_lea.vmem [#allocation12], %s305
          %308 = vsyncadd %s303, 0
          %s309 = smul.addr %s29, 128
          %s310 = smul.addr %s309, 4
          %s311 = scalar_lea.hbm %s3, %s310
          %s312 = sshll.u32 %s311, 4
          %s313 = int_to_ptr.hbm [resolvable:$true] %s312
          %s314 = sshll.u32 %s306, 4
          %s315 = int_to_ptr.vmem [resolvable:$true] %s314
          %320 = dma.hbm_to_vmem [thread:$0]  %s313, 8192, %s315, %s303, 256, 256, 16
        $region32: #{tpu_custom_call.1} parent=27 // pred_fallthru
          _
        // Predicated region
        $region33: #{tpu_custom_call.1} parent=27 // pred_check
          %p321 = pneg %p152
        $region34: #{tpu_custom_call.1} parent=27 // pred_check_branch
          %323 = sbr.rel (%p321) target = $region36
        $region35: #{tpu_custom_call.1} parent=27 // pred_region
          %s324 = sand.u32 %s21, 1
          %s325 = scalar_lea.sflag [#allocation13], %s324
          %s326 = sand.u32 %s142, 1
          %s327 = smul.addr %s326, 4
          %s328 = scalar_lea.vmem [#allocation14], %s327
          %s329 = smul.u32 4, %s29
          %331 = vsyncadd %s325, 0
          %s332 = scalar_lea.hbm %s4, %s329
          %s334 = sshll.u32 %s332, 4
          %s335 = int_to_ptr.hbm [resolvable:$true] %s334
          %s336 = sshll.u32 %s328, 4
          %s337 = int_to_ptr.vmem [resolvable:$true] %s336
          %339 = dma.hbm_to_vmem [thread:$0]  %s335, 64, %s337, %s325
        $region36: #{tpu_custom_call.1} parent=27 // pred_fallthru
          _
        // Predicated region
        $region37: #{tpu_custom_call.1} parent=27 // pred_check
          %p340 = pneg %p178
        $region38: #{tpu_custom_call.1} parent=27 // pred_check_branch
          %342 = sbr.rel (%p340) target = $region40
        $region39: #{tpu_custom_call.1} parent=27 // pred_region
          %s343 = sand.u32 %s21, 1
          %s344 = scalar_lea.sflag [#allocation16], %s343
          %s345 = sand.u32 %s168, 1
          %s346 = smul.addr %s345, 512
          %s347 = scalar_lea.vmem [#allocation15], %s346
          %349 = vsyncadd %s344, 0
          %s350 = smul.addr %s29, 128
          %s351 = smul.addr %s350, 4
          %s352 = scalar_lea.hbm %s5, %s351
          %s353 = sshll.u32 %s352, 4
          %s354 = int_to_ptr.hbm [resolvable:$true] %s353
          %s355 = sshll.u32 %s347, 4
          %s356 = int_to_ptr.vmem [resolvable:$true] %s355
          %361 = dma.hbm_to_vmem [thread:$0]  %s354, 8192, %s356, %s344, 256, 256, 16
        $region40: #{tpu_custom_call.1} parent=27 // pred_fallthru
          _
        // Predicated region
        $region41: #{tpu_custom_call.1} parent=27 // pred_check
          %p362 = pneg %p204
        $region42: #{tpu_custom_call.1} parent=27 // pred_check_branch
          %364 = sbr.rel (%p362) target = $region44
        $region43: #{tpu_custom_call.1} parent=27 // pred_region
          %s365 = sand.u32 %s21, 1
          %s366 = scalar_lea.sflag [#allocation16], %s365
          %s367 = sand.u32 %s194, 1
          %s368 = smul.addr %s367, 4
          %s369 = scalar_lea.vmem [#allocation17], %s368
          %s370 = smul.u32 4, %s29
          %372 = vsyncadd %s366, 0
          %s373 = scalar_lea.hbm %s6, %s370
          %s375 = sshll.u32 %s373, 4
          %s376 = int_to_ptr.hbm [resolvable:$true] %s375
          %s377 = sshll.u32 %s369, 4
          %s378 = int_to_ptr.vmem [resolvable:$true] %s377
          %380 = dma.hbm_to_vmem [thread:$0]  %s376, 64, %s378, %s366
        $region44: #{tpu_custom_call.1} parent=27 // pred_fallthru
          _
      $region28: #{tpu_custom_call.1} parent=5 // pred_fallthru
        _
      %p381 = scmp.le.s32.totalorder 1, %s21
      %p382 = scmp.lt.s32.totalorder %s21, 3
      %p383 = pnand %p381, %p382
      %p384 = pneg %p383
      // Predicated region
      $region45: #{tpu_custom_call.1} parent=5 // pred_check
        _
      $region46: #{tpu_custom_call.1} parent=5 // pred_check_branch
        %386 = sbr.rel (%p383) target = $region48
      $region47: #{tpu_custom_call.1} parent=5 // pred_region
        %s387 = ssub.s32 %s21, 1
        // Predicated region
        $region49: #{tpu_custom_call.1} parent=47 // pred_check
          %p388 = pneg %p59
        $region50: #{tpu_custom_call.1} parent=47 // pred_check_branch
          %390 = sbr.rel (%p388) target = $region52
        $region51: #{tpu_custom_call.1} parent=47 // pred_region
          %392 = dma.done [#allocation8], 64
        $region52: #{tpu_custom_call.1} parent=47 // pred_fallthru
          _
        // Predicated region
        $region53: #{tpu_custom_call.1} parent=47 // pred_check
          %p393 = pneg %p85
        $region54: #{tpu_custom_call.1} parent=47 // pred_check_branch
          %395 = sbr.rel (%p393) target = $region56
        $region55: #{tpu_custom_call.1} parent=47 // pred_region
          %397 = dma.done [#allocation10], 64
        $region56: #{tpu_custom_call.1} parent=47 // pred_fallthru
          _
        // Predicated region
        $region57: #{tpu_custom_call.1} parent=47 // pred_check
          %p398 = pneg %p106
        $region58: #{tpu_custom_call.1} parent=47 // pred_check_branch
          %400 = sbr.rel (%p398) target = $region60
        $region59: #{tpu_custom_call.1} parent=47 // pred_region
          %402 = dma.done [#allocation10], 2048
        $region60: #{tpu_custom_call.1} parent=47 // pred_fallthru
          _
        %s403 = sand.u32 %s26, 1
        %s404 = scalar_lea.sflag [#allocation13], %s403
        %s405 = sand.u32 %s119, 1
        %s406 = smul.addr %s405, 512
        %s407 = scalar_lea.vmem [#allocation12], %s406
        // Predicated region
        $region61: #{tpu_custom_call.1} parent=47 // pred_check
          %p408 = pneg %p132
        $region62: #{tpu_custom_call.1} parent=47 // pred_check_branch
          %410 = sbr.rel (%p408) target = $region64
        $region63: #{tpu_custom_call.1} parent=47 // pred_region
          %412 = dma.done %s404, 8192
        $region64: #{tpu_custom_call.1} parent=47 // pred_fallthru
          _
        %s413 = sand.u32 %s26, 1
        %s414 = scalar_lea.sflag [#allocation13], %s413
        %s415 = sand.u32 %s145, 1
        %s416 = smul.addr %s415, 4
        %s417 = scalar_lea.vmem [#allocation14], %s416
        // Predicated region
        $region65: #{tpu_custom_call.1} parent=47 // pred_check
          %p418 = pneg %p158
        $region66: #{tpu_custom_call.1} parent=47 // pred_check_branch
          %420 = sbr.rel (%p418) target = $region68
        $region67: #{tpu_custom_call.1} parent=47 // pred_region
          %422 = dma.done %s414, 64
        $region68: #{tpu_custom_call.1} parent=47 // pred_fallthru
          _
        %s423 = sand.u32 %s26, 1
        %s424 = scalar_lea.sflag [#allocation16], %s423
        %s425 = sand.u32 %s171, 1
        %s426 = smul.addr %s425, 512
        %s427 = scalar_lea.vmem [#allocation15], %s426
        // Predicated region
        $region69: #{tpu_custom_call.1} parent=47 // pred_check
          %p428 = pneg %p184
        $region70: #{tpu_custom_call.1} parent=47 // pred_check_branch
          %430 = sbr.rel (%p428) target = $region72
        $region71: #{tpu_custom_call.1} parent=47 // pred_region
          %432 = dma.done %s424, 8192
        $region72: #{tpu_custom_call.1} parent=47 // pred_fallthru
          _
        %s433 = sand.u32 %s26, 1
        %s434 = scalar_lea.sflag [#allocation16], %s433
        %s435 = sand.u32 %s197, 1
        %s436 = smul.addr %s435, 4
        %s437 = scalar_lea.vmem [#allocation17], %s436
        // Predicated region
        $region73: #{tpu_custom_call.1} parent=47 // pred_check
          %p438 = pneg %p210
        $region74: #{tpu_custom_call.1} parent=47 // pred_check_branch
          %440 = sbr.rel (%p438) target = $region76
        $region75: #{tpu_custom_call.1} parent=47 // pred_region
          %442 = dma.done %s434, 64
        $region76: #{tpu_custom_call.1} parent=47 // pred_fallthru
          _
        %p443 = pneg %p59
        %p444 = pneg %p56
        %p445 = pneg %p85
        %p446 = pneg %p82
        %p447 = pneg %p106
        %p448 = pneg %p103
        %s449 = sand.u32 %s26, 1
        %s450 = scalar_lea.sflag [#allocation13], %s449
        %s451 = sand.u32 %s119, 1
        %s452 = smul.addr %s451, 512
        %s453 = scalar_lea.vmem [#allocation12], %s452
        %p454 = pneg %p132
        %p455 = pneg %p129
        %s456 = sand.u32 %s26, 1
        %s457 = scalar_lea.sflag [#allocation13], %s456
        %s458 = sand.u32 %s145, 1
        %s459 = smul.addr %s458, 4
        %s460 = scalar_lea.vmem [#allocation14], %s459
        %p461 = pneg %p158
        %p462 = pneg %p155
        %s463 = sand.u32 %s26, 1
        %s464 = scalar_lea.sflag [#allocation16], %s463
        %s465 = sand.u32 %s171, 1
        %s466 = smul.addr %s465, 512
        %s467 = scalar_lea.vmem [#allocation15], %s466
        %p468 = pneg %p184
        %p469 = pneg %p181
        %s470 = sand.u32 %s26, 1
        %s471 = scalar_lea.sflag [#allocation16], %s470
        %s472 = sand.u32 %s197, 1
        %s473 = smul.addr %s472, 4
        %s474 = scalar_lea.vmem [#allocation17], %s473
        %p475 = pneg %p210
        %p476 = pneg %p207
        %p477 = pneg %p236
        %p478 = pneg %p233
        %p479 = scmp.lt.s32.totalorder %s30, 0
        %s480 = scalar_select %p479, %s30, 0
        %s481 = smul.addr %s480, 2
        %s482 = scalar_lea.vmem %s7, %s481
        %s483 = smul.u32 4, %s31
        %s484 = smul.u32 4, %s31
        %p485 = scmp.lt.s32.totalorder %s30, 0
        %s486 = scalar_select %p485, %s30, 0
        %s487 = smul.addr %s486, 2
        %s488 = scalar_lea.vmem %s7, %s487
        %p489 = scmp.eq.s32.totalorder %s31, 0
        // Predicated region
        $region77: #{tpu_custom_call.1} parent=47 // pred_check
          %p490 = pneg %p489
        $region78: #{tpu_custom_call.1} parent=47 // pred_check_branch
          %492 = sbr.rel (%p490) target = $region80
        $region79: #{tpu_custom_call.1} parent=47 // pred_region
          %v493 = vld [vmem:[#allocation7] sm:$0xf]
          %495 = vst [vmem:[#allocation1] ss:$4 sm:$0xff] %v493
          %v496 = vld.sshfl [vmem:[#allocation1] sm:$0xff pattern:$0x73625140]
          %v497 = vld.sshfl [vmem:[#allocation1 + $0x8] sm:$0xff pattern:$0x73625140]
          %v500 = vpack.c.bf16 %v497, %v496
          %v502 = vrot.slane %v500, 3
          %vm503 = vcmask 1040384
          %v506 = vsel %vm503, %v500, %v502
          %508 = vst [vmem:[#allocation2] sm:$0x3] %v506
          %v509 = vld [vmem:[#allocation9] sm:$0x3]
          %v510 = vpack.c.bf16 %v509, %v509
          %511 = vst [vmem:[#allocation3] sm:$0x1] %v510
          %v512 = vld [vmem:[#allocation9 + $0x2] sm:$0x3]
          %v513 = vcvt.f32.s32.to.zero.pseudo %v512
          %v514 = vlaneseq
          %v515 = vand.u32 %v514, 127
          %v516 = vperm.slane %v513, 0
          %v517 = vlaneseq
          %v518 = vshrl.u32 %v517, 7
          %520 = vset.pattern.permute.xlu0 %v518
          %521 = vperm.xlu0 %520, %v516
          %v522 = vpop.permute.xlu0 %521
          %v523 = vperm.slane %v513, 1
          %v524 = vlaneseq
          %v525 = vshrl.u32 %v524, 7
          %527 = vset.pattern.permute.xlu0 %v525
          %528 = vperm.xlu0 %527, %v523
          %v529 = vpop.permute.xlu0 %528
          %vm530 = vcmp.eq.s32.totalorder %v522, %v515
          %vm531 = vcmp.eq.s32.totalorder %v529, %v515
          %v532 = vsel %vm530, 1, 0
          %v533 = vsel %vm531, 1, 0
          %v534 = vcvt.s32.f32 %v532
          %v535 = vcvt.s32.f32 %v533
          %v536 = vrot.slane %v534, 4
          %v537 = vadd.f32 %v534, %v536
          %v538 = vrot.slane %v537, 2
          %v539 = vadd.f32 %v537, %v538
          %v540 = vrot.slane %v539, 1
          %v541 = vadd.f32 %v539, %v540
          %v542 = vrot.slane %v535, 4
          %v543 = vadd.f32 %v535, %v542
          %v544 = vrot.slane %v543, 2
          %v545 = vadd.f32 %v543, %v544
          %v546 = vrot.slane %v545, 1
          %v547 = vadd.f32 %v545, %v546
          %v548 = vmul.f32 %v541, 0.125
          %v549 = vmul.f32 %v547, 0.125
          %v550 = vld [vmem:[#allocation11] sm:$0xff]
          %v551 = vld [vmem:[#allocation11 + $0x8] sm:$0xff]
          %v552 = vld [vmem:[#allocation11 + $0x10] sm:$0xff]
          %v553 = vld [vmem:[#allocation11 + $0x18] sm:$0xff]
          %v554 = vld [vmem:[#allocation11 + $0x20] sm:$0xff]
          %v555 = vld [vmem:[#allocation11 + $0x28] sm:$0xff]
          %v556 = vld [vmem:[#allocation11 + $0x30] sm:$0xff]
          %v557 = vld [vmem:[#allocation11 + $0x38] sm:$0xff]
          %v558 = vld [vmem:[#allocation11 + $0x40] sm:$0xff]
          %v559 = vld [vmem:[#allocation11 + $0x48] sm:$0xff]
          %v560 = vld [vmem:[#allocation11 + $0x50] sm:$0xff]
          %v561 = vld [vmem:[#allocation11 + $0x58] sm:$0xff]
          %v562 = vld [vmem:[#allocation11 + $0x60] sm:$0xff]
          %v563 = vld [vmem:[#allocation11 + $0x68] sm:$0xff]
          %v564 = vld [vmem:[#allocation11 + $0x70] sm:$0xff]
          %v565 = vld [vmem:[#allocation11 + $0x78] sm:$0xff]
          %vm568 = vcmask 1041409
          %v569 = vsel %vm568, %v549, %v548
          %571 = vmatpush.msra.mxu0 %v565
          %572 = vmatpush.msra.mxu0 %v564
          %573 = vmatpush.msra.mxu0 %v563
          %574 = vmatpush.msra.mxu0 %v562
          %575 = vmatpush.msra.mxu0 %v561
          %576 = vmatpush.msra.mxu0 %v560
          %577 = vmatpush.msra.mxu0 %v559
          %578 = vmatpush.msra.mxu0 %v558
          %579 = vmatpush.msra.mxu0 %v557
          %580 = vmatpush.msra.mxu0 %v556
          %581 = vmatpush.msra.mxu0 %v555
          %582 = vmatpush.msra.mxu0 %v554
          %583 = vmatpush.msra.mxu0 %v553
          %584 = vmatpush.msra.mxu0 %v552
          %585 = vmatpush.msra.mxu0 %v551
          %586 = vmatpush.msra.mxu0 %v550
          %587 = vmatmul.f32.gmra.mxu0 %v569
          %v588 = vpop.f32.mrf.mxu0
          %v589 = vadd.f32 0.0, %v588
          %590 = vdwg.mxu0
          %v591 = vpack.c.bf16 %v589, %v589
          %592 = vst [vmem:[#allocation3 + $0x1] sm:$0x1] %v591
          %vm593 = vcmask 1024
          %594 = vst.msk [vmem:[#allocation4] sm:$0x3] %vm593, 0.0
          %595 = vst.msk [vmem:[#allocation5] sm:$0x3] %vm593, 0.0
          %596 = vst.msk [vmem:[#allocation6] sm:$0x3] %vm593, 0.0
        $region80: #{tpu_custom_call.1} parent=47 // pred_fallthru
          _
        %v597 = vld [vmem:[#allocation2] sm:$0x3]
        %v598 = vld [vmem:[%s407] sm:$0xff]
        %v599 = vld [vmem:[%s407 + $0x8] sm:$0xff]
        %v600 = vld [vmem:[%s407 + $0x10] sm:$0xff]
        %v601 = vld [vmem:[%s407 + $0x18] sm:$0xff]
        %v602 = vld [vmem:[%s407 + $0x20] sm:$0xff]
        %v603 = vld [vmem:[%s407 + $0x28] sm:$0xff]
        %v604 = vld [vmem:[%s407 + $0x30] sm:$0xff]
        %v605 = vld [vmem:[%s407 + $0x38] sm:$0xff]
        %v606 = vld [vmem:[%s407 + $0x40] sm:$0xff]
        %v607 = vld [vmem:[%s407 + $0x48] sm:$0xff]
        %v608 = vld [vmem:[%s407 + $0x50] sm:$0xff]
        %v609 = vld [vmem:[%s407 + $0x58] sm:$0xff]
        %v610 = vld [vmem:[%s407 + $0x60] sm:$0xff]
        %v611 = vld [vmem:[%s407 + $0x68] sm:$0xff]
        %v612 = vld [vmem:[%s407 + $0x70] sm:$0xff]
        %v613 = vld [vmem:[%s407 + $0x78] sm:$0xff]
        %v614 = vld [vmem:[%s407 + $0x80] sm:$0xff]
        %v615 = vld [vmem:[%s407 + $0x88] sm:$0xff]
        %v616 = vld [vmem:[%s407 + $0x90] sm:$0xff]
        %v617 = vld [vmem:[%s407 + $0x98] sm:$0xff]
        %v618 = vld [vmem:[%s407 + $0xa0] sm:$0xff]
        %v619 = vld [vmem:[%s407 + $0xa8] sm:$0xff]
        %v620 = vld [vmem:[%s407 + $0xb0] sm:$0xff]
        %v621 = vld [vmem:[%s407 + $0xb8] sm:$0xff]
        %v622 = vld [vmem:[%s407 + $0xc0] sm:$0xff]
        %v623 = vld [vmem:[%s407 + $0xc8] sm:$0xff]
        %v624 = vld [vmem:[%s407 + $0xd0] sm:$0xff]
        %v625 = vld [vmem:[%s407 + $0xd8] sm:$0xff]
        %v626 = vld [vmem:[%s407 + $0xe0] sm:$0xff]
        %v627 = vld [vmem:[%s407 + $0xe8] sm:$0xff]
        %v628 = vld [vmem:[%s407 + $0xf0] sm:$0xff]
        %v629 = vld [vmem:[%s407 + $0xf8] sm:$0xff]
        %v630 = vld [vmem:[%s407 + $0x100] sm:$0xff]
        %v631 = vld [vmem:[%s407 + $0x108] sm:$0xff]
        %v632 = vld [vmem:[%s407 + $0x110] sm:$0xff]
        %v633 = vld [vmem:[%s407 + $0x118] sm:$0xff]
        %v634 = vld [vmem:[%s407 + $0x120] sm:$0xff]
        %v635 = vld [vmem:[%s407 + $0x128] sm:$0xff]
        %v636 = vld [vmem:[%s407 + $0x130] sm:$0xff]
        %v637 = vld [vmem:[%s407 + $0x138] sm:$0xff]
        %v638 = vld [vmem:[%s407 + $0x140] sm:$0xff]
        %v639 = vld [vmem:[%s407 + $0x148] sm:$0xff]
        %v640 = vld [vmem:[%s407 + $0x150] sm:$0xff]
        %v641 = vld [vmem:[%s407 + $0x158] sm:$0xff]
        %v642 = vld [vmem:[%s407 + $0x160] sm:$0xff]
        %v643 = vld [vmem:[%s407 + $0x168] sm:$0xff]
        %v644 = vld [vmem:[%s407 + $0x170] sm:$0xff]
        %v645 = vld [vmem:[%s407 + $0x178] sm:$0xff]
        %v646 = vld [vmem:[%s407 + $0x180] sm:$0xff]
        %v647 = vld [vmem:[%s407 + $0x188] sm:$0xff]
        %v648 = vld [vmem:[%s407 + $0x190] sm:$0xff]
        %v649 = vld [vmem:[%s407 + $0x198] sm:$0xff]
        %v650 = vld [vmem:[%s407 + $0x1a0] sm:$0xff]
        %v651 = vld [vmem:[%s407 + $0x1a8] sm:$0xff]
        %v652 = vld [vmem:[%s407 + $0x1b0] sm:$0xff]
        %v653 = vld [vmem:[%s407 + $0x1b8] sm:$0xff]
        %v654 = vld [vmem:[%s407 + $0x1c0] sm:$0xff]
        %v655 = vld [vmem:[%s407 + $0x1c8] sm:$0xff]
        %v656 = vld [vmem:[%s407 + $0x1d0] sm:$0xff]
        %v657 = vld [vmem:[%s407 + $0x1d8] sm:$0xff]
        %v658 = vld [vmem:[%s407 + $0x1e0] sm:$0xff]
        %v659 = vld [vmem:[%s407 + $0x1e8] sm:$0xff]
        %v660 = vld [vmem:[%s407 + $0x1f0] sm:$0xff]
        %v661 = vld [vmem:[%s407 + $0x1f8] sm:$0xff]
        %v662 = vld [vmem:[%s417] sm:$0xf]
        %v664 = vperm.slane %v662, 0
        %v665 = vperm.slane %v662, 1
        %v666 = vperm.slane %v662, 2
        %v667 = vperm.slane %v662, 3
        %673 = vst [vmem:[#allocation1] ss:$9 sm:$0xff] %v597
        %v674 = vld [vmem:[#allocation1] sm:$0xff]
        %v675 = vld [vmem:[#allocation1 + $0x9] sm:$0xff]
        %v742 = vunpack.c.l.b16 %v598
        %v743 = vunpack.c.h.b16 %v598
        %v744 = vunpack.c.l.b16 %v599
        %v745 = vunpack.c.h.b16 %v599
        %v746 = vunpack.c.l.b16 %v600
        %v747 = vunpack.c.h.b16 %v600
        %v748 = vunpack.c.l.b16 %v601
        %v749 = vunpack.c.h.b16 %v601
        %v750 = vunpack.c.l.b16 %v602
        %v751 = vunpack.c.h.b16 %v602
        %v752 = vunpack.c.l.b16 %v603
        %v753 = vunpack.c.h.b16 %v603
        %v754 = vunpack.c.l.b16 %v604
        %v755 = vunpack.c.h.b16 %v604
        %v756 = vunpack.c.l.b16 %v605
        %v757 = vunpack.c.h.b16 %v605
        %v758 = vunpack.c.l.b16 %v606
        %v759 = vunpack.c.h.b16 %v606
        %v760 = vunpack.c.l.b16 %v607
        %v761 = vunpack.c.h.b16 %v607
        %v762 = vunpack.c.l.b16 %v608
        %v763 = vunpack.c.h.b16 %v608
        %v764 = vunpack.c.l.b16 %v609
        %v765 = vunpack.c.h.b16 %v609
        %v766 = vunpack.c.l.b16 %v610
        %v767 = vunpack.c.h.b16 %v610
        %v768 = vunpack.c.l.b16 %v611
        %v769 = vunpack.c.h.b16 %v611
        %v770 = vunpack.c.l.b16 %v612
        %v771 = vunpack.c.h.b16 %v612
        %v772 = vunpack.c.l.b16 %v613
        %v773 = vunpack.c.h.b16 %v613
        %v774 = vunpack.c.l.b16 %v614
        %v775 = vunpack.c.h.b16 %v614
        %v776 = vunpack.c.l.b16 %v615
        %v777 = vunpack.c.h.b16 %v615
        %v778 = vunpack.c.l.b16 %v616
        %v779 = vunpack.c.h.b16 %v616
        %v780 = vunpack.c.l.b16 %v617
        %v781 = vunpack.c.h.b16 %v617
        %v782 = vunpack.c.l.b16 %v618
        %v783 = vunpack.c.h.b16 %v618
        %v784 = vunpack.c.l.b16 %v619
        %v785 = vunpack.c.h.b16 %v619
        %v786 = vunpack.c.l.b16 %v620
        %v787 = vunpack.c.h.b16 %v620
        %v788 = vunpack.c.l.b16 %v621
        %v789 = vunpack.c.h.b16 %v621
        %v790 = vunpack.c.l.b16 %v622
        %v791 = vunpack.c.h.b16 %v622
        %v792 = vunpack.c.l.b16 %v623
        %v793 = vunpack.c.h.b16 %v623
        %v794 = vunpack.c.l.b16 %v624
        %v795 = vunpack.c.h.b16 %v624
        %v796 = vunpack.c.l.b16 %v625
        %v797 = vunpack.c.h.b16 %v625
        %v798 = vunpack.c.l.b16 %v626
        %v799 = vunpack.c.h.b16 %v626
        %v800 = vunpack.c.l.b16 %v627
        %v801 = vunpack.c.h.b16 %v627
        %v802 = vunpack.c.l.b16 %v628
        %v803 = vunpack.c.h.b16 %v628
        %v804 = vunpack.c.l.b16 %v629
        %v805 = vunpack.c.h.b16 %v629
        %v806 = vunpack.c.l.b16 %v630
        %v807 = vunpack.c.h.b16 %v630
        %v808 = vunpack.c.l.b16 %v631
        %v809 = vunpack.c.h.b16 %v631
        %v810 = vunpack.c.l.b16 %v632
        %v811 = vunpack.c.h.b16 %v632
        %v812 = vunpack.c.l.b16 %v633
        %v813 = vunpack.c.h.b16 %v633
        %v814 = vunpack.c.l.b16 %v634
        %v815 = vunpack.c.h.b16 %v634
        %v816 = vunpack.c.l.b16 %v635
        %v817 = vunpack.c.h.b16 %v635
        %v818 = vunpack.c.l.b16 %v636
        %v819 = vunpack.c.h.b16 %v636
        %v820 = vunpack.c.l.b16 %v637
        %v821 = vunpack.c.h.b16 %v637
        %v822 = vunpack.c.l.b16 %v638
        %v823 = vunpack.c.h.b16 %v638
        %v824 = vunpack.c.l.b16 %v639
        %v825 = vunpack.c.h.b16 %v639
        %v826 = vunpack.c.l.b16 %v640
        %v827 = vunpack.c.h.b16 %v640
        %v828 = vunpack.c.l.b16 %v641
        %v829 = vunpack.c.h.b16 %v641
        %v830 = vunpack.c.l.b16 %v642
        %v831 = vunpack.c.h.b16 %v642
        %v832 = vunpack.c.l.b16 %v643
        %v833 = vunpack.c.h.b16 %v643
        %v834 = vunpack.c.l.b16 %v644
        %v835 = vunpack.c.h.b16 %v644
        %v836 = vunpack.c.l.b16 %v645
        %v837 = vunpack.c.h.b16 %v645
        %v838 = vunpack.c.l.b16 %v646
        %v839 = vunpack.c.h.b16 %v646
        %v840 = vunpack.c.l.b16 %v647
        %v841 = vunpack.c.h.b16 %v647
        %v842 = vunpack.c.l.b16 %v648
        %v843 = vunpack.c.h.b16 %v648
        %v844 = vunpack.c.l.b16 %v649
        %v845 = vunpack.c.h.b16 %v649
        %v846 = vunpack.c.l.b16 %v650
        %v847 = vunpack.c.h.b16 %v650
        %v848 = vunpack.c.l.b16 %v651
        %v849 = vunpack.c.h.b16 %v651
        %v850 = vunpack.c.l.b16 %v652
        %v851 = vunpack.c.h.b16 %v652
        %v852 = vunpack.c.l.b16 %v653
        %v853 = vunpack.c.h.b16 %v653
        %v854 = vunpack.c.l.b16 %v654
        %v855 = vunpack.c.h.b16 %v654
        %v856 = vunpack.c.l.b16 %v655
        %v857 = vunpack.c.h.b16 %v655
        %v858 = vunpack.c.l.b16 %v656
        %v859 = vunpack.c.h.b16 %v656
        %v860 = vunpack.c.l.b16 %v657
        %v861 = vunpack.c.h.b16 %v657
        %v862 = vunpack.c.l.b16 %v658
        %v863 = vunpack.c.h.b16 %v658
        %v864 = vunpack.c.l.b16 %v659
        %v865 = vunpack.c.h.b16 %v659
        %v866 = vunpack.c.l.b16 %v660
        %v867 = vunpack.c.h.b16 %v660
        %v868 = vunpack.c.l.b16 %v661
        %v869 = vunpack.c.h.b16 %v661
        %v870 = vpack.c.b16 %v746, %v742
        %v871 = vpack.c.b16 %v747, %v743
        %v872 = vpack.c.b16 %v748, %v744
        %v873 = vpack.c.b16 %v749, %v745
        %v874 = vpack.c.b16 %v754, %v750
        %v875 = vpack.c.b16 %v755, %v751
        %v876 = vpack.c.b16 %v756, %v752
        %v877 = vpack.c.b16 %v757, %v753
        %v878 = vpack.c.b16 %v762, %v758
        %v879 = vpack.c.b16 %v763, %v759
        %v880 = vpack.c.b16 %v764, %v760
        %v881 = vpack.c.b16 %v765, %v761
        %v882 = vpack.c.b16 %v770, %v766
        %v883 = vpack.c.b16 %v771, %v767
        %v884 = vpack.c.b16 %v772, %v768
        %v885 = vpack.c.b16 %v773, %v769
        %v886 = vpack.c.b16 %v778, %v774
        %v887 = vpack.c.b16 %v779, %v775
        %v888 = vpack.c.b16 %v780, %v776
        %v889 = vpack.c.b16 %v781, %v777
        %v890 = vpack.c.b16 %v786, %v782
        %v891 = vpack.c.b16 %v787, %v783
        %v892 = vpack.c.b16 %v788, %v784
        %v893 = vpack.c.b16 %v789, %v785
        %v894 = vpack.c.b16 %v794, %v790
        %v895 = vpack.c.b16 %v795, %v791
        %v896 = vpack.c.b16 %v796, %v792
        %v897 = vpack.c.b16 %v797, %v793
        %v898 = vpack.c.b16 %v802, %v798
        %v899 = vpack.c.b16 %v803, %v799
        %v900 = vpack.c.b16 %v804, %v800
        %v901 = vpack.c.b16 %v805, %v801
        %v902 = vpack.c.b16 %v810, %v806
        %v903 = vpack.c.b16 %v811, %v807
        %v904 = vpack.c.b16 %v812, %v808
        %v905 = vpack.c.b16 %v813, %v809
        %v906 = vpack.c.b16 %v818, %v814
        %v907 = vpack.c.b16 %v819, %v815
        %v908 = vpack.c.b16 %v820, %v816
        %v909 = vpack.c.b16 %v821, %v817
        %v910 = vpack.c.b16 %v826, %v822
        %v911 = vpack.c.b16 %v827, %v823
        %v912 = vpack.c.b16 %v828, %v824
        %v913 = vpack.c.b16 %v829, %v825
        %v914 = vpack.c.b16 %v834, %v830
        %v915 = vpack.c.b16 %v835, %v831
        %v916 = vpack.c.b16 %v836, %v832
        %v917 = vpack.c.b16 %v837, %v833
        %v918 = vpack.c.b16 %v842, %v838
        %v919 = vpack.c.b16 %v843, %v839
        %v920 = vpack.c.b16 %v844, %v840
        %v921 = vpack.c.b16 %v845, %v841
        %v922 = vpack.c.b16 %v850, %v846
        %v923 = vpack.c.b16 %v851, %v847
        %v924 = vpack.c.b16 %v852, %v848
        %v925 = vpack.c.b16 %v853, %v849
        %v926 = vpack.c.b16 %v858, %v854
        %v927 = vpack.c.b16 %v859, %v855
        %v928 = vpack.c.b16 %v860, %v856
        %v929 = vpack.c.b16 %v861, %v857
        %v930 = vpack.c.b16 %v866, %v862
        %v931 = vpack.c.b16 %v867, %v863
        %v932 = vpack.c.b16 %v868, %v864
        %v933 = vpack.c.b16 %v869, %v865
        %998 = vmatpush.bf16.msra.mxu0 %v898
        %999 = vmatpush.bf16.msra.mxu0 %v894
        %1000 = vmatpush.bf16.msra.mxu0 %v890
        %1001 = vmatpush.bf16.msra.mxu0 %v886
        %1002 = vmatpush.bf16.msra.mxu0 %v882
        %1003 = vmatpush.bf16.msra.mxu0 %v878
        %1004 = vmatpush.bf16.msra.mxu0 %v874
        %1005 = vmatpush.bf16.msra.mxu0 %v870
        %1006 = vmatmul.bf16.gmra.mxu0 %v674
        %v1007 = vpop.f32.mrf.mxu0
        %v1008 = vadd.f32 %v664, %v1007
        %v1009 = vpop.f32.mrf.mxu0
        %1010 = vdwg.mxu0
        %1011 = vmatpush.bf16.msra.mxu0 %v930
        %1012 = vmatpush.bf16.msra.mxu0 %v926
        %1013 = vmatpush.bf16.msra.mxu0 %v922
        %1014 = vmatpush.bf16.msra.mxu0 %v918
        %1015 = vmatpush.bf16.msra.mxu0 %v914
        %1016 = vmatpush.bf16.msra.mxu0 %v910
        %1017 = vmatpush.bf16.msra.mxu0 %v906
        %1018 = vmatpush.bf16.msra.mxu0 %v902
        %1019 = vmatmul.bf16.gmra.mxu0 %v675
        %v1020 = vpop.f32.mrf.mxu0
        %v1021 = vadd.f32 %v1008, %v1020
        %v1022 = vpop.f32.mrf.mxu0
        %1023 = vdwg.mxu0
        %1024 = vmatpush.bf16.msra.mxu0 %v899
        %1025 = vmatpush.bf16.msra.mxu0 %v895
        %1026 = vmatpush.bf16.msra.mxu0 %v891
        %1027 = vmatpush.bf16.msra.mxu0 %v887
        %1028 = vmatpush.bf16.msra.mxu0 %v883
        %1029 = vmatpush.bf16.msra.mxu0 %v879
        %1030 = vmatpush.bf16.msra.mxu0 %v875
        %1031 = vmatpush.bf16.msra.mxu0 %v871
        %1032 = vmatmul.bf16.gmra.mxu0 %v674
        %v1033 = vpop.f32.mrf.mxu0
        %v1034 = vadd.f32 %v665, %v1033
        %v1035 = vpop.f32.mrf.mxu0
        %1036 = vdwg.mxu0
        %1037 = vmatpush.bf16.msra.mxu0 %v931
        %1038 = vmatpush.bf16.msra.mxu0 %v927
        %1039 = vmatpush.bf16.msra.mxu0 %v923
        %1040 = vmatpush.bf16.msra.mxu0 %v919
        %1041 = vmatpush.bf16.msra.mxu0 %v915
        %1042 = vmatpush.bf16.msra.mxu0 %v911
        %1043 = vmatpush.bf16.msra.mxu0 %v907
        %1044 = vmatpush.bf16.msra.mxu0 %v903
        %1045 = vmatmul.bf16.gmra.mxu0 %v675
        %v1046 = vpop.f32.mrf.mxu0
        %v1047 = vadd.f32 %v1034, %v1046
        %v1048 = vpop.f32.mrf.mxu0
        %1049 = vdwg.mxu0
        %1050 = vmatpush.bf16.msra.mxu0 %v900
        %1051 = vmatpush.bf16.msra.mxu0 %v896
        %1052 = vmatpush.bf16.msra.mxu0 %v892
        %1053 = vmatpush.bf16.msra.mxu0 %v888
        %1054 = vmatpush.bf16.msra.mxu0 %v884
        %1055 = vmatpush.bf16.msra.mxu0 %v880
        %1056 = vmatpush.bf16.msra.mxu0 %v876
        %1057 = vmatpush.bf16.msra.mxu0 %v872
        %1058 = vmatmul.bf16.gmra.mxu0 %v674
        %v1059 = vpop.f32.mrf.mxu0
        %v1060 = vadd.f32 %v666, %v1059
        %v1061 = vpop.f32.mrf.mxu0
        %1062 = vdwg.mxu0
        %1063 = vmatpush.bf16.msra.mxu0 %v932
        %1064 = vmatpush.bf16.msra.mxu0 %v928
        %1065 = vmatpush.bf16.msra.mxu0 %v924
        %1066 = vmatpush.bf16.msra.mxu0 %v920
        %1067 = vmatpush.bf16.msra.mxu0 %v916
        %1068 = vmatpush.bf16.msra.mxu0 %v912
        %1069 = vmatpush.bf16.msra.mxu0 %v908
        %1070 = vmatpush.bf16.msra.mxu0 %v904
        %1071 = vmatmul.bf16.gmra.mxu0 %v675
        %v1072 = vpop.f32.mrf.mxu0
        %v1073 = vadd.f32 %v1060, %v1072
        %v1074 = vpop.f32.mrf.mxu0
        %1075 = vdwg.mxu0
        %1076 = vmatpush.bf16.msra.mxu0 %v901
        %1077 = vmatpush.bf16.msra.mxu0 %v897
        %1078 = vmatpush.bf16.msra.mxu0 %v893
        %1079 = vmatpush.bf16.msra.mxu0 %v889
        %1080 = vmatpush.bf16.msra.mxu0 %v885
        %1081 = vmatpush.bf16.msra.mxu0 %v881
        %1082 = vmatpush.bf16.msra.mxu0 %v877
        %1083 = vmatpush.bf16.msra.mxu0 %v873
        %1084 = vmatmul.bf16.gmra.mxu0 %v674
        %v1085 = vpop.f32.mrf.mxu0
        %v1086 = vadd.f32 %v667, %v1085
        %v1087 = vpop.f32.mrf.mxu0
        %1088 = vdwg.mxu0
        %1089 = vmatpush.bf16.msra.mxu0 %v933
        %1090 = vmatpush.bf16.msra.mxu0 %v929
        %1091 = vmatpush.bf16.msra.mxu0 %v925
        %1092 = vmatpush.bf16.msra.mxu0 %v921
        %1093 = vmatpush.bf16.msra.mxu0 %v917
        %1094 = vmatpush.bf16.msra.mxu0 %v913
        %1095 = vmatpush.bf16.msra.mxu0 %v909
        %1096 = vmatpush.bf16.msra.mxu0 %v905
        %1097 = vmatmul.bf16.gmra.mxu0 %v675
        %v1098 = vpop.f32.mrf.mxu0
        %v1099 = vadd.f32 %v1086, %v1098
        %v1100 = vpop.f32.mrf.mxu0
        %1101 = vdwg.mxu0
        %v1102 = vmax.f32 %v1021, 0.0
        %v1103 = vmax.f32 %v1047, 0.0
        %v1104 = vmax.f32 %v1073, 0.0
        %v1105 = vmax.f32 %v1099, 0.0
        %v1106 = vld [vmem:[#allocation3] sm:$0x3]
        %v1107 = vld [vmem:[%s427] sm:$0xff]
        %v1108 = vld [vmem:[%s427 + $0x8] sm:$0xff]
        %v1109 = vld [vmem:[%s427 + $0x10] sm:$0xff]
        %v1110 = vld [vmem:[%s427 + $0x18] sm:$0xff]
        %v1111 = vld [vmem:[%s427 + $0x20] sm:$0xff]
        %v1112 = vld [vmem:[%s427 + $0x28] sm:$0xff]
        %v1113 = vld [vmem:[%s427 + $0x30] sm:$0xff]
        %v1114 = vld [vmem:[%s427 + $0x38] sm:$0xff]
        %v1115 = vld [vmem:[%s427 + $0x40] sm:$0xff]
        %v1116 = vld [vmem:[%s427 + $0x48] sm:$0xff]
        %v1117 = vld [vmem:[%s427 + $0x50] sm:$0xff]
        %v1118 = vld [vmem:[%s427 + $0x58] sm:$0xff]
        %v1119 = vld [vmem:[%s427 + $0x60] sm:$0xff]
        %v1120 = vld [vmem:[%s427 + $0x68] sm:$0xff]
        %v1121 = vld [vmem:[%s427 + $0x70] sm:$0xff]
        %v1122 = vld [vmem:[%s427 + $0x78] sm:$0xff]
        %v1123 = vld [vmem:[%s427 + $0x80] sm:$0xff]
        %v1124 = vld [vmem:[%s427 + $0x88] sm:$0xff]
        %v1125 = vld [vmem:[%s427 + $0x90] sm:$0xff]
        %v1126 = vld [vmem:[%s427 + $0x98] sm:$0xff]
        %v1127 = vld [vmem:[%s427 + $0xa0] sm:$0xff]
        %v1128 = vld [vmem:[%s427 + $0xa8] sm:$0xff]
        %v1129 = vld [vmem:[%s427 + $0xb0] sm:$0xff]
        %v1130 = vld [vmem:[%s427 + $0xb8] sm:$0xff]
        %v1131 = vld [vmem:[%s427 + $0xc0] sm:$0xff]
        %v1132 = vld [vmem:[%s427 + $0xc8] sm:$0xff]
        %v1133 = vld [vmem:[%s427 + $0xd0] sm:$0xff]
        %v1134 = vld [vmem:[%s427 + $0xd8] sm:$0xff]
        %v1135 = vld [vmem:[%s427 + $0xe0] sm:$0xff]
        %v1136 = vld [vmem:[%s427 + $0xe8] sm:$0xff]
        %v1137 = vld [vmem:[%s427 + $0xf0] sm:$0xff]
        %v1138 = vld [vmem:[%s427 + $0xf8] sm:$0xff]
        %v1139 = vld [vmem:[%s427 + $0x100] sm:$0xff]
        %v1140 = vld [vmem:[%s427 + $0x108] sm:$0xff]
        %v1141 = vld [vmem:[%s427 + $0x110] sm:$0xff]
        %v1142 = vld [vmem:[%s427 + $0x118] sm:$0xff]
        %v1143 = vld [vmem:[%s427 + $0x120] sm:$0xff]
        %v1144 = vld [vmem:[%s427 + $0x128] sm:$0xff]
        %v1145 = vld [vmem:[%s427 + $0x130] sm:$0xff]
        %v1146 = vld [vmem:[%s427 + $0x138] sm:$0xff]
        %v1147 = vld [vmem:[%s427 + $0x140] sm:$0xff]
        %v1148 = vld [vmem:[%s427 + $0x148] sm:$0xff]
        %v1149 = vld [vmem:[%s427 + $0x150] sm:$0xff]
        %v1150 = vld [vmem:[%s427 + $0x158] sm:$0xff]
        %v1151 = vld [vmem:[%s427 + $0x160] sm:$0xff]
        %v1152 = vld [vmem:[%s427 + $0x168] sm:$0xff]
        %v1153 = vld [vmem:[%s427 + $0x170] sm:$0xff]
        %v1154 = vld [vmem:[%s427 + $0x178] sm:$0xff]
        %v1155 = vld [vmem:[%s427 + $0x180] sm:$0xff]
        %v1156 = vld [vmem:[%s427 + $0x188] sm:$0xff]
        %v1157 = vld [vmem:[%s427 + $0x190] sm:$0xff]
        %v1158 = vld [vmem:[%s427 + $0x198] sm:$0xff]
        %v1159 = vld [vmem:[%s427 + $0x1a0] sm:$0xff]
        %v1160 = vld [vmem:[%s427 + $0x1a8] sm:$0xff]
        %v1161 = vld [vmem:[%s427 + $0x1b0] sm:$0xff]
        %v1162 = vld [vmem:[%s427 + $0x1b8] sm:$0xff]
        %v1163 = vld [vmem:[%s427 + $0x1c0] sm:$0xff]
        %v1164 = vld [vmem:[%s427 + $0x1c8] sm:$0xff]
        %v1165 = vld [vmem:[%s427 + $0x1d0] sm:$0xff]
        %v1166 = vld [vmem:[%s427 + $0x1d8] sm:$0xff]
        %v1167 = vld [vmem:[%s427 + $0x1e0] sm:$0xff]
        %v1168 = vld [vmem:[%s427 + $0x1e8] sm:$0xff]
        %v1169 = vld [vmem:[%s427 + $0x1f0] sm:$0xff]
        %v1170 = vld [vmem:[%s427 + $0x1f8] sm:$0xff]
        %v1171 = vld [vmem:[%s437] sm:$0xf]
        %v1173 = vperm.slane %v1171, 0
        %v1174 = vperm.slane %v1171, 1
        %v1175 = vperm.slane %v1171, 2
        %v1176 = vperm.slane %v1171, 3
        %1182 = vst [vmem:[#allocation1] ss:$9 sm:$0xff] %v1106
        %v1183 = vld [vmem:[#allocation1] sm:$0xff]
        %v1184 = vld [vmem:[#allocation1 + $0x9] sm:$0xff]
        %v1251 = vunpack.c.l.b16 %v1107
        %v1252 = vunpack.c.h.b16 %v1107
        %v1253 = vunpack.c.l.b16 %v1108
        %v1254 = vunpack.c.h.b16 %v1108
        %v1255 = vunpack.c.l.b16 %v1109
        %v1256 = vunpack.c.h.b16 %v1109
        %v1257 = vunpack.c.l.b16 %v1110
        %v1258 = vunpack.c.h.b16 %v1110
        %v1259 = vunpack.c.l.b16 %v1111
        %v1260 = vunpack.c.h.b16 %v1111
        %v1261 = vunpack.c.l.b16 %v1112
        %v1262 = vunpack.c.h.b16 %v1112
        %v1263 = vunpack.c.l.b16 %v1113
        %v1264 = vunpack.c.h.b16 %v1113
        %v1265 = vunpack.c.l.b16 %v1114
        %v1266 = vunpack.c.h.b16 %v1114
        %v1267 = vunpack.c.l.b16 %v1115
        %v1268 = vunpack.c.h.b16 %v1115
        %v1269 = vunpack.c.l.b16 %v1116
        %v1270 = vunpack.c.h.b16 %v1116
        %v1271 = vunpack.c.l.b16 %v1117
        %v1272 = vunpack.c.h.b16 %v1117
        %v1273 = vunpack.c.l.b16 %v1118
        %v1274 = vunpack.c.h.b16 %v1118
        %v1275 = vunpack.c.l.b16 %v1119
        %v1276 = vunpack.c.h.b16 %v1119
        %v1277 = vunpack.c.l.b16 %v1120
        %v1278 = vunpack.c.h.b16 %v1120
        %v1279 = vunpack.c.l.b16 %v1121
        %v1280 = vunpack.c.h.b16 %v1121
        %v1281 = vunpack.c.l.b16 %v1122
        %v1282 = vunpack.c.h.b16 %v1122
        %v1283 = vunpack.c.l.b16 %v1123
        %v1284 = vunpack.c.h.b16 %v1123
        %v1285 = vunpack.c.l.b16 %v1124
        %v1286 = vunpack.c.h.b16 %v1124
        %v1287 = vunpack.c.l.b16 %v1125
        %v1288 = vunpack.c.h.b16 %v1125
        %v1289 = vunpack.c.l.b16 %v1126
        %v1290 = vunpack.c.h.b16 %v1126
        %v1291 = vunpack.c.l.b16 %v1127
        %v1292 = vunpack.c.h.b16 %v1127
        %v1293 = vunpack.c.l.b16 %v1128
        %v1294 = vunpack.c.h.b16 %v1128
        %v1295 = vunpack.c.l.b16 %v1129
        %v1296 = vunpack.c.h.b16 %v1129
        %v1297 = vunpack.c.l.b16 %v1130
        %v1298 = vunpack.c.h.b16 %v1130
        %v1299 = vunpack.c.l.b16 %v1131
        %v1300 = vunpack.c.h.b16 %v1131
        %v1301 = vunpack.c.l.b16 %v1132
        %v1302 = vunpack.c.h.b16 %v1132
        %v1303 = vunpack.c.l.b16 %v1133
        %v1304 = vunpack.c.h.b16 %v1133
        %v1305 = vunpack.c.l.b16 %v1134
        %v1306 = vunpack.c.h.b16 %v1134
        %v1307 = vunpack.c.l.b16 %v1135
        %v1308 = vunpack.c.h.b16 %v1135
        %v1309 = vunpack.c.l.b16 %v1136
        %v1310 = vunpack.c.h.b16 %v1136
        %v1311 = vunpack.c.l.b16 %v1137
        %v1312 = vunpack.c.h.b16 %v1137
        %v1313 = vunpack.c.l.b16 %v1138
        %v1314 = vunpack.c.h.b16 %v1138
        %v1315 = vunpack.c.l.b16 %v1139
        %v1316 = vunpack.c.h.b16 %v1139
        %v1317 = vunpack.c.l.b16 %v1140
        %v1318 = vunpack.c.h.b16 %v1140
        %v1319 = vunpack.c.l.b16 %v1141
        %v1320 = vunpack.c.h.b16 %v1141
        %v1321 = vunpack.c.l.b16 %v1142
        %v1322 = vunpack.c.h.b16 %v1142
        %v1323 = vunpack.c.l.b16 %v1143
        %v1324 = vunpack.c.h.b16 %v1143
        %v1325 = vunpack.c.l.b16 %v1144
        %v1326 = vunpack.c.h.b16 %v1144
        %v1327 = vunpack.c.l.b16 %v1145
        %v1328 = vunpack.c.h.b16 %v1145
        %v1329 = vunpack.c.l.b16 %v1146
        %v1330 = vunpack.c.h.b16 %v1146
        %v1331 = vunpack.c.l.b16 %v1147
        %v1332 = vunpack.c.h.b16 %v1147
        %v1333 = vunpack.c.l.b16 %v1148
        %v1334 = vunpack.c.h.b16 %v1148
        %v1335 = vunpack.c.l.b16 %v1149
        %v1336 = vunpack.c.h.b16 %v1149
        %v1337 = vunpack.c.l.b16 %v1150
        %v1338 = vunpack.c.h.b16 %v1150
        %v1339 = vunpack.c.l.b16 %v1151
        %v1340 = vunpack.c.h.b16 %v1151
        %v1341 = vunpack.c.l.b16 %v1152
        %v1342 = vunpack.c.h.b16 %v1152
        %v1343 = vunpack.c.l.b16 %v1153
        %v1344 = vunpack.c.h.b16 %v1153
        %v1345 = vunpack.c.l.b16 %v1154
        %v1346 = vunpack.c.h.b16 %v1154
        %v1347 = vunpack.c.l.b16 %v1155
        %v1348 = vunpack.c.h.b16 %v1155
        %v1349 = vunpack.c.l.b16 %v1156
        %v1350 = vunpack.c.h.b16 %v1156
        %v1351 = vunpack.c.l.b16 %v1157
        %v1352 = vunpack.c.h.b16 %v1157
        %v1353 = vunpack.c.l.b16 %v1158
        %v1354 = vunpack.c.h.b16 %v1158
        %v1355 = vunpack.c.l.b16 %v1159
        %v1356 = vunpack.c.h.b16 %v1159
        %v1357 = vunpack.c.l.b16 %v1160
        %v1358 = vunpack.c.h.b16 %v1160
        %v1359 = vunpack.c.l.b16 %v1161
        %v1360 = vunpack.c.h.b16 %v1161
        %v1361 = vunpack.c.l.b16 %v1162
        %v1362 = vunpack.c.h.b16 %v1162
        %v1363 = vunpack.c.l.b16 %v1163
        %v1364 = vunpack.c.h.b16 %v1163
        %v1365 = vunpack.c.l.b16 %v1164
        %v1366 = vunpack.c.h.b16 %v1164
        %v1367 = vunpack.c.l.b16 %v1165
        %v1368 = vunpack.c.h.b16 %v1165
        %v1369 = vunpack.c.l.b16 %v1166
        %v1370 = vunpack.c.h.b16 %v1166
        %v1371 = vunpack.c.l.b16 %v1167
        %v1372 = vunpack.c.h.b16 %v1167
        %v1373 = vunpack.c.l.b16 %v1168
        %v1374 = vunpack.c.h.b16 %v1168
        %v1375 = vunpack.c.l.b16 %v1169
        %v1376 = vunpack.c.h.b16 %v1169
        %v1377 = vunpack.c.l.b16 %v1170
        %v1378 = vunpack.c.h.b16 %v1170
        %v1379 = vpack.c.b16 %v1255, %v1251
        %v1380 = vpack.c.b16 %v1256, %v1252
        %v1381 = vpack.c.b16 %v1257, %v1253
        %v1382 = vpack.c.b16 %v1258, %v1254
        %v1383 = vpack.c.b16 %v1263, %v1259
        %v1384 = vpack.c.b16 %v1264, %v1260
        %v1385 = vpack.c.b16 %v1265, %v1261
        %v1386 = vpack.c.b16 %v1266, %v1262
        %v1387 = vpack.c.b16 %v1271, %v1267
        %v1388 = vpack.c.b16 %v1272, %v1268
        %v1389 = vpack.c.b16 %v1273, %v1269
        %v1390 = vpack.c.b16 %v1274, %v1270
        %v1391 = vpack.c.b16 %v1279, %v1275
        %v1392 = vpack.c.b16 %v1280, %v1276
        %v1393 = vpack.c.b16 %v1281, %v1277
        %v1394 = vpack.c.b16 %v1282, %v1278
        %v1395 = vpack.c.b16 %v1287, %v1283
        %v1396 = vpack.c.b16 %v1288, %v1284
        %v1397 = vpack.c.b16 %v1289, %v1285
        %v1398 = vpack.c.b16 %v1290, %v1286
        %v1399 = vpack.c.b16 %v1295, %v1291
        %v1400 = vpack.c.b16 %v1296, %v1292
        %v1401 = vpack.c.b16 %v1297, %v1293
        %v1402 = vpack.c.b16 %v1298, %v1294
        %v1403 = vpack.c.b16 %v1303, %v1299
        %v1404 = vpack.c.b16 %v1304, %v1300
        %v1405 = vpack.c.b16 %v1305, %v1301
        %v1406 = vpack.c.b16 %v1306, %v1302
        %v1407 = vpack.c.b16 %v1311, %v1307
        %v1408 = vpack.c.b16 %v1312, %v1308
        %v1409 = vpack.c.b16 %v1313, %v1309
        %v1410 = vpack.c.b16 %v1314, %v1310
        %v1411 = vpack.c.b16 %v1319, %v1315
        %v1412 = vpack.c.b16 %v1320, %v1316
        %v1413 = vpack.c.b16 %v1321, %v1317
        %v1414 = vpack.c.b16 %v1322, %v1318
        %v1415 = vpack.c.b16 %v1327, %v1323
        %v1416 = vpack.c.b16 %v1328, %v1324
        %v1417 = vpack.c.b16 %v1329, %v1325
        %v1418 = vpack.c.b16 %v1330, %v1326
        %v1419 = vpack.c.b16 %v1335, %v1331
        %v1420 = vpack.c.b16 %v1336, %v1332
        %v1421 = vpack.c.b16 %v1337, %v1333
        %v1422 = vpack.c.b16 %v1338, %v1334
        %v1423 = vpack.c.b16 %v1343, %v1339
        %v1424 = vpack.c.b16 %v1344, %v1340
        %v1425 = vpack.c.b16 %v1345, %v1341
        %v1426 = vpack.c.b16 %v1346, %v1342
        %v1427 = vpack.c.b16 %v1351, %v1347
        %v1428 = vpack.c.b16 %v1352, %v1348
        %v1429 = vpack.c.b16 %v1353, %v1349
        %v1430 = vpack.c.b16 %v1354, %v1350
        %v1431 = vpack.c.b16 %v1359, %v1355
        %v1432 = vpack.c.b16 %v1360, %v1356
        %v1433 = vpack.c.b16 %v1361, %v1357
        %v1434 = vpack.c.b16 %v1362, %v1358
        %v1435 = vpack.c.b16 %v1367, %v1363
        %v1436 = vpack.c.b16 %v1368, %v1364
        %v1437 = vpack.c.b16 %v1369, %v1365
        %v1438 = vpack.c.b16 %v1370, %v1366
        %v1439 = vpack.c.b16 %v1375, %v1371
        %v1440 = vpack.c.b16 %v1376, %v1372
        %v1441 = vpack.c.b16 %v1377, %v1373
        %v1442 = vpack.c.b16 %v1378, %v1374
        %1507 = vmatpush.bf16.msra.mxu0 %v1407
        %1508 = vmatpush.bf16.msra.mxu0 %v1403
        %1509 = vmatpush.bf16.msra.mxu0 %v1399
        %1510 = vmatpush.bf16.msra.mxu0 %v1395
        %1511 = vmatpush.bf16.msra.mxu0 %v1391
        %1512 = vmatpush.bf16.msra.mxu0 %v1387
        %1513 = vmatpush.bf16.msra.mxu0 %v1383
        %1514 = vmatpush.bf16.msra.mxu0 %v1379
        %1515 = vmatmul.bf16.gmra.mxu0 %v1183
        %v1516 = vpop.f32.mrf.mxu0
        %v1517 = vadd.f32 %v1173, %v1516
        %v1518 = vpop.f32.mrf.mxu0
        %1519 = vdwg.mxu0
        %1520 = vmatpush.bf16.msra.mxu0 %v1439
        %1521 = vmatpush.bf16.msra.mxu0 %v1435
        %1522 = vmatpush.bf16.msra.mxu0 %v1431
        %1523 = vmatpush.bf16.msra.mxu0 %v1427
        %1524 = vmatpush.bf16.msra.mxu0 %v1423
        %1525 = vmatpush.bf16.msra.mxu0 %v1419
        %1526 = vmatpush.bf16.msra.mxu0 %v1415
        %1527 = vmatpush.bf16.msra.mxu0 %v1411
        %1528 = vmatmul.bf16.gmra.mxu0 %v1184
        %v1529 = vpop.f32.mrf.mxu0
        %v1530 = vadd.f32 %v1517, %v1529
        %v1531 = vpop.f32.mrf.mxu0
        %1532 = vdwg.mxu0
        %1533 = vmatpush.bf16.msra.mxu0 %v1408
        %1534 = vmatpush.bf16.msra.mxu0 %v1404
        %1535 = vmatpush.bf16.msra.mxu0 %v1400
        %1536 = vmatpush.bf16.msra.mxu0 %v1396
        %1537 = vmatpush.bf16.msra.mxu0 %v1392
        %1538 = vmatpush.bf16.msra.mxu0 %v1388
        %1539 = vmatpush.bf16.msra.mxu0 %v1384
        %1540 = vmatpush.bf16.msra.mxu0 %v1380
        %1541 = vmatmul.bf16.gmra.mxu0 %v1183
        %v1542 = vpop.f32.mrf.mxu0
        %v1543 = vadd.f32 %v1174, %v1542
        %v1544 = vpop.f32.mrf.mxu0
        %1545 = vdwg.mxu0
        %1546 = vmatpush.bf16.msra.mxu0 %v1440
        %1547 = vmatpush.bf16.msra.mxu0 %v1436
        %1548 = vmatpush.bf16.msra.mxu0 %v1432
        %1549 = vmatpush.bf16.msra.mxu0 %v1428
        %1550 = vmatpush.bf16.msra.mxu0 %v1424
        %1551 = vmatpush.bf16.msra.mxu0 %v1420
        %1552 = vmatpush.bf16.msra.mxu0 %v1416
        %1553 = vmatpush.bf16.msra.mxu0 %v1412
        %1554 = vmatmul.bf16.gmra.mxu0 %v1184
        %v1555 = vpop.f32.mrf.mxu0
        %v1556 = vadd.f32 %v1543, %v1555
        %v1557 = vpop.f32.mrf.mxu0
        %1558 = vdwg.mxu0
        %1559 = vmatpush.bf16.msra.mxu0 %v1409
        %1560 = vmatpush.bf16.msra.mxu0 %v1405
        %1561 = vmatpush.bf16.msra.mxu0 %v1401
        %1562 = vmatpush.bf16.msra.mxu0 %v1397
        %1563 = vmatpush.bf16.msra.mxu0 %v1393
        %1564 = vmatpush.bf16.msra.mxu0 %v1389
        %1565 = vmatpush.bf16.msra.mxu0 %v1385
        %1566 = vmatpush.bf16.msra.mxu0 %v1381
        %1567 = vmatmul.bf16.gmra.mxu0 %v1183
        %v1568 = vpop.f32.mrf.mxu0
        %v1569 = vadd.f32 %v1175, %v1568
        %v1570 = vpop.f32.mrf.mxu0
        %1571 = vdwg.mxu0
        %1572 = vmatpush.bf16.msra.mxu0 %v1441
        %1573 = vmatpush.bf16.msra.mxu0 %v1437
        %1574 = vmatpush.bf16.msra.mxu0 %v1433
        %1575 = vmatpush.bf16.msra.mxu0 %v1429
        %1576 = vmatpush.bf16.msra.mxu0 %v1425
        %1577 = vmatpush.bf16.msra.mxu0 %v1421
        %1578 = vmatpush.bf16.msra.mxu0 %v1417
        %1579 = vmatpush.bf16.msra.mxu0 %v1413
        %1580 = vmatmul.bf16.gmra.mxu0 %v1184
        %v1581 = vpop.f32.mrf.mxu0
        %v1582 = vadd.f32 %v1569, %v1581
        %v1583 = vpop.f32.mrf.mxu0
        %1584 = vdwg.mxu0
        %1585 = vmatpush.bf16.msra.mxu0 %v1410
        %1586 = vmatpush.bf16.msra.mxu0 %v1406
        %1587 = vmatpush.bf16.msra.mxu0 %v1402
        %1588 = vmatpush.bf16.msra.mxu0 %v1398
        %1589 = vmatpush.bf16.msra.mxu0 %v1394
        %1590 = vmatpush.bf16.msra.mxu0 %v1390
        %1591 = vmatpush.bf16.msra.mxu0 %v1386
        %1592 = vmatpush.bf16.msra.mxu0 %v1382
        %1593 = vmatmul.bf16.gmra.mxu0 %v1183
        %v1594 = vpop.f32.mrf.mxu0
        %v1595 = vadd.f32 %v1176, %v1594
        %v1596 = vpop.f32.mrf.mxu0
        %1597 = vdwg.mxu0
        %1598 = vmatpush.bf16.msra.mxu0 %v1442
        %1599 = vmatpush.bf16.msra.mxu0 %v1438
        %1600 = vmatpush.bf16.msra.mxu0 %v1434
        %1601 = vmatpush.bf16.msra.mxu0 %v1430
        %1602 = vmatpush.bf16.msra.mxu0 %v1426
        %1603 = vmatpush.bf16.msra.mxu0 %v1422
        %1604 = vmatpush.bf16.msra.mxu0 %v1418
        %1605 = vmatpush.bf16.msra.mxu0 %v1414
        %1606 = vmatmul.bf16.gmra.mxu0 %v1184
        %v1607 = vpop.f32.mrf.mxu0
        %v1608 = vadd.f32 %v1595, %v1607
        %v1609 = vpop.f32.mrf.mxu0
        %1610 = vdwg.mxu0
        %v1611 = vmax.f32 %v1530, 0.0
        %v1612 = vmax.f32 %v1556, 0.0
        %v1613 = vmax.f32 %v1582, 0.0
        %v1614 = vmax.f32 %v1608, 0.0
        %v1615 = vld [vmem:[#allocation4] sm:$0x3]
        %v1616 = vmul.f32 %v1102, %v1611
        %v1617 = vmul.f32 %v1103, %v1612
        %v1618 = vmul.f32 %v1104, %v1613
        %v1619 = vmul.f32 %v1105, %v1614
        %vm1620 = vcmask 1041408
        %v1621 = vsel %vm1620, %v1616, 0.0
        %v1622 = vsel %vm1620, %v1617, 0.0
        %v1623 = vadd.f32 %v1621, %v1622
        %v1624 = vsel %vm1620, %v1618, 0.0
        %v1625 = vadd.f32 %v1623, %v1624
        %v1626 = vsel %vm1620, %v1619, 0.0
        %v1627 = vadd.f32 %v1625, %v1626
        %1628 = vadd.xlane.f32.xlu0 %v1627
        %v1629 = vpop.xlane.xlu0 %1628
        %v1630 = vadd.f32 %v1615, %v1629
        %vm1631 = vcmask 1024
        %1632 = vst.msk [vmem:[#allocation4] sm:$0x3] %vm1631, %v1630
        %v1633 = vld [vmem:[#allocation5] sm:$0x3]
        %v1634 = vmul.f32 %v1102, %v1102
        %v1635 = vmul.f32 %v1103, %v1103
        %v1636 = vmul.f32 %v1104, %v1104
        %v1637 = vmul.f32 %v1105, %v1105
        %v1638 = vsel %vm1620, %v1634, 0.0
        %v1639 = vsel %vm1620, %v1635, 0.0
        %v1640 = vadd.f32 %v1638, %v1639
        %v1641 = vsel %vm1620, %v1636, 0.0
        %v1642 = vadd.f32 %v1640, %v1641
        %v1643 = vsel %vm1620, %v1637, 0.0
        %v1644 = vadd.f32 %v1642, %v1643
        %1645 = vadd.xlane.f32.xlu0 %v1644
        %v1646 = vpop.xlane.xlu0 %1645
        %v1647 = vadd.f32 %v1633, %v1646
        %1648 = vst.msk [vmem:[#allocation5] sm:$0x3] %vm1631, %v1647
        %v1649 = vld [vmem:[#allocation6] sm:$0x3]
        %v1650 = vmul.f32 %v1611, %v1611
        %v1651 = vmul.f32 %v1612, %v1612
        %v1652 = vmul.f32 %v1613, %v1613
        %v1653 = vmul.f32 %v1614, %v1614
        %v1654 = vsel %vm1620, %v1650, 0.0
        %v1655 = vsel %vm1620, %v1651, 0.0
        %v1656 = vadd.f32 %v1654, %v1655
        %v1657 = vsel %vm1620, %v1652, 0.0
        %v1658 = vadd.f32 %v1656, %v1657
        %v1659 = vsel %vm1620, %v1653, 0.0
        %v1660 = vadd.f32 %v1658, %v1659
        %1661 = vadd.xlane.f32.xlu0 %v1660
        %v1662 = vpop.xlane.xlu0 %1661
        %v1663 = vadd.f32 %v1649, %v1662
        %1664 = vst.msk [vmem:[#allocation6] sm:$0x3] %vm1631, %v1663
        %p1665 = scmp.eq.s32.totalorder %s31, 1
        // Predicated region
        $region81: #{tpu_custom_call.1} parent=47 // pred_check
          %p1666 = pneg %p1665
        $region82: #{tpu_custom_call.1} parent=47 // pred_check_branch
          %1668 = sbr.rel (%p1666) target = $region84
        $region83: #{tpu_custom_call.1} parent=47 // pred_region
          %v1669 = vld [vmem:[#allocation5] sm:$0x3]
          %v1670 = vrsqrt.pop %v1669
          %v1671 = vmul.f32 %v1670, %v1669
          %v1672 = vmul.f32 %v1671, %v1670
          %v1673 = vmul.f32 0.5, %v1672
          %v1674 = vsub.f32 1.5, %v1673
          %v1675 = vmul.f32 %v1670, %v1674
          %v1676 = vmul.f32 %v1669, %v1675
          %vm1677 = vcmp.eq.f32.partialorder %v1669, inf
          %v1678 = vsel %vm1677, %v1669, %v1676
          %vm1679 = vcmp.eq.f32.partialorder %v1669, 0.0
          %v1680 = vand.u32 %v1669, 2147483648
          %v1681 = vsel %vm1679, %v1680, %v1678
          %v1682 = vld [vmem:[#allocation6] sm:$0x3]
          %v1683 = vrsqrt.pop %v1682
          %v1684 = vmul.f32 %v1683, %v1682
          %v1685 = vmul.f32 %v1684, %v1683
          %v1686 = vmul.f32 0.5, %v1685
          %v1687 = vsub.f32 1.5, %v1686
          %v1688 = vmul.f32 %v1683, %v1687
          %v1689 = vmul.f32 %v1682, %v1688
          %vm1690 = vcmp.eq.f32.partialorder %v1682, inf
          %v1691 = vsel %vm1690, %v1682, %v1689
          %vm1692 = vcmp.eq.f32.partialorder %v1682, 0.0
          %v1693 = vand.u32 %v1682, 2147483648
          %v1694 = vsel %vm1692, %v1693, %v1691
          %v1695 = vmul.f32 %v1681, %v1694
          %v1696 = vmax.f32 %v1695, 1e-08
          %v1697 = vld [vmem:[#allocation4] sm:$0x3]
          %v1698 = vrcp.pop %v1696
          %v1699 = vmul.f32 %v1696, %v1698
          %v1700 = vsub.f32 1.0, %v1699
          %v1701 = vmul.f32 %v1698, %v1700
          %v1702 = vadd.f32 %v1698, %v1701
          %vm1703 = vweird.f32 %v1696
          %vm1704 = vweird.f32 %v1698
          %vm1705 = vmor %vm1703, %vm1704
          %v1706 = vsel %vm1705, %v1698, %v1702
          %v1707 = vand.u32 2147483647, %v1696
          %vm1708 = vcmp.eq.f32.partialorder %v1707, 8.507059e+37
          %v1709 = vand.u32 %v1696, 2147483648
          %v1710 = vor.u32 1.1754944e-38, %v1709
          %v1711 = vsel %vm1708, %v1710, %v1706
          %v1712 = vmul.f32 %v1697, %v1711
          %1713 = vst.msk [vmem:[%s488] sm:$0x3] %vm1631, %v1712
        $region84: #{tpu_custom_call.1} parent=47 // pred_fallthru
          _
        %p1714 = scmp.lt.s32.totalorder %s30, 0
        %s1715 = scalar_select %p1714, %s30, 0
        %s1716 = smul.addr %s1715, 2
        %s1717 = scalar_lea.vmem %s7, %s1716
        // Predicated region
        $region85: #{tpu_custom_call.1} parent=47 // pred_check
          %p1718 = pneg %p233
        $region86: #{tpu_custom_call.1} parent=47 // pred_check_branch
          %1720 = sbr.rel (%p1718) target = $region88
        $region87: #{tpu_custom_call.1} parent=47 // pred_region
          _
        $region88: #{tpu_custom_call.1} parent=47 // pred_fallthru
          _
        // Predicated region
        $region89: #{tpu_custom_call.1} parent=47 // pred_check
          %p1721 = pneg %p233
        $region90: #{tpu_custom_call.1} parent=47 // pred_check_branch
          %1723 = sbr.rel (%p1721) target = $region92
        $region91: #{tpu_custom_call.1} parent=47 // pred_region
          %p1724 = scmp.lt.s32.totalorder %s30, 0
          %s1725 = scalar_select %p1724, %s30, 0
          %s1726 = smul.addr %s1725, 2
          %s1727 = scalar_lea.vmem %s7, %s1726
        $region92: #{tpu_custom_call.1} parent=47 // pred_fallthru
          _
      $region48: #{tpu_custom_call.1} parent=5 // pred_fallthru
        _
      %p1728 = scmp.le.s32.totalorder 2, %s21
      // Predicated region
      $region93: #{tpu_custom_call.1} parent=5 // pred_check
        %p1729 = pneg %p1728
      $region94: #{tpu_custom_call.1} parent=5 // pred_check_branch
        %1731 = sbr.rel (%p1729) target = $region96
      $region95: #{tpu_custom_call.1} parent=5 // pred_region
        %s1732 = ssub.s32 %s21, 2
      $region96: #{tpu_custom_call.1} parent=5 // pred_fallthru
        _
    $region6: #{tpu_custom_call.1} parent=1 // loop_footer
      %s25 = sadd.s32 1, %s21
    $region7: #{tpu_custom_call.1} parent=1 // loop_footer_branch
      %20 = sbr.rel target = $region3
    $region8: #{tpu_custom_call.1} parent=1 // loop_exit
      _
    %1733 = vsyncpa [#allocation8], 1
    %s1734 = scalar_lea.sflag [#allocation8], 1
    %1735 = vsyncpa %s1734, 1
    %1736 = vsyncpa [#allocation10], 1
    %1737 = vsyncpa [#allocation13], 1
    %s1738 = scalar_lea.sflag [#allocation13], 1
    %1739 = vsyncpa %s1738, 1
    %1740 = vsyncpa [#allocation16], 1
    %s1741 = scalar_lea.sflag [#allocation16], 1
    %1742 = vsyncpa %s1741, 1

</llo_original>
